<compile_context>
chip_gen: v5e
topology: v5e:2x2
jax: 0.10.0
libtpu: 0.0.40
codegen_flags: <defaults>
</compile_context>

<pallas_src>
import functools

import jax
import jax.numpy as jnp
from jax.experimental import pallas as pl
from jax.experimental.pallas import tpu as pltpu


# ----------------------------- kernel helpers -------------------------------

def _layernorm(x, gamma, beta, eps=1e-6):
    # f32 math. NOTE: PyTorch nn.LayerNorm default eps is 1e-5; ViTPose configs
    # typically use 1e-6 — verify against the target checkpoint.
    mu = jnp.mean(x, axis=-1, keepdims=True)
    var = jnp.mean((x - mu) ** 2, axis=-1, keepdims=True)
    return (x - mu) * jax.lax.rsqrt(var + eps) * gamma + beta


# ------------------------------- fused kernel --------------------------------

def backbone_kernel(xp_ref, pw_ref, pb_ref, pos_ref,
                    ln1g_ref, ln1b_ref, qkvw_ref, qkvb_ref,
                    projw_ref, projb_ref, ln2g_ref, ln2b_ref,
                    fc1w_ref, fc1b_ref, fc2w_ref, fc2b_ref,
                    ng_ref, nb_ref,
                    o_ref, carry_ref, *, num_heads):
    d = pl.program_id(1)
    last = pl.num_programs(1) - 1

    # ---- depth == 0: fused patch embed + positional embedding ----
    @pl.when(d == 0)
    def _():
        xp = xp_ref[0].astype(jnp.bfloat16)                       # (N, P) bf16
        tok = jnp.dot(xp, pw_ref[...],                            # bf16 MXU
                      preferred_element_type=jnp.float32)
        carry_ref[0] = tok + pb_ref[...] + pos_ref[0]

    x = carry_ref[0]                                              # (N, D) f32
    N, D = x.shape
    hd = D // num_heads
    scale = 1.0 / (hd ** 0.5)

    # ---------------- multi-head self-attention ----------------
    h = _layernorm(x, ln1g_ref[0], ln1b_ref[0]).astype(jnp.bfloat16)
    qkv_w = qkvw_ref[0]                                           # (3, D, D) bf16
    qkv_b = qkvb_ref[0]                                           # (3, 1, D) f32
    q = jnp.dot(h, qkv_w[0], preferred_element_type=jnp.float32) + qkv_b[0]
    k = jnp.dot(h, qkv_w[1], preferred_element_type=jnp.float32) + qkv_b[1]
    v = jnp.dot(h, qkv_w[2], preferred_element_type=jnp.float32) + qkv_b[2]

    # batched-head attention: (N, D) -> (H, N, hd)
    q = (q * scale).reshape(N, num_heads, hd).transpose(1, 0, 2).astype(jnp.bfloat16)
    k = k.reshape(N, num_heads, hd).transpose(1, 0, 2).astype(jnp.bfloat16)
    v = v.reshape(N, num_heads, hd).transpose(1, 0, 2).astype(jnp.bfloat16)

    att = jnp.einsum("hqd,hkd->hqk", q, k,
                     preferred_element_type=jnp.float32)          # (H, N, N) f32
    att = att - jnp.max(att, axis=-1, keepdims=True)
    att = jnp.exp(att)
    att = att * pl.reciprocal(jnp.sum(att, axis=-1, keepdims=True), approx=True)

    out = jnp.einsum("hqk,hkd->hqd", att.astype(jnp.bfloat16), v,
                     preferred_element_type=jnp.float32)          # (H, N, hd)
    out = out.transpose(1, 0, 2).reshape(N, D)

    attn_out = jnp.dot(out.astype(jnp.bfloat16), projw_ref[0],
                       preferred_element_type=jnp.float32) + projb_ref[0]
    x = x + attn_out

    # --------------------------- MLP ----------------------------
    h = _layernorm(x, ln2g_ref[0], ln2b_ref[0]).astype(jnp.bfloat16)
    h = jnp.dot(h, fc1w_ref[0], preferred_element_type=jnp.float32) + fc1b_ref[0]
    # TODO(synk): PyTorch nn.GELU default is exact-erf; tanh approximation used
    # here for robust Mosaic lowering.
    h = jax.nn.gelu(h, approximate=True)
    h = jnp.dot(h.astype(jnp.bfloat16), fc2w_ref[0],
                preferred_element_type=jnp.float32) + fc2b_ref[0]
    x = x + h

    carry_ref[0] = x

    # ---- depth == last: fused final LayerNorm + output writeback ----
    @pl.when(d == last)
    def _():
        o_ref[0] = _layernorm(x, ng_ref[...], nb_ref[...])


# ------------------------------- wrapper --------------------------------------

def _const_spec(shape):
    # full-array block, constant index across the whole grid (fetched once,
    # stays resident across all depth steps of a batch element)
    n = len(shape)
    return pl.BlockSpec(tuple(shape), lambda b, l, _n=n: (0,) * _n)


def _layer_spec(shape):
    # stacked (depth, ...) parameter: one layer slice per depth grid step,
    # double-buffered by default so next-layer weights prefetch behind compute
    rest = tuple(shape[1:])
    n = len(rest)
    return pl.BlockSpec((1,) + rest, lambda b, l, _n=n: (l,) + (0,) * _n)


def vit_backbone(xp, params, *, num_heads):
    B, N, P = xp.shape
    D = params["patch_w"].shape[1]
    depth = params["qkv_w"].shape[0]

    tok_in_spec = pl.BlockSpec((1, N, P), lambda b, l: (b, 0, 0))
    tok_out_spec = pl.BlockSpec((1, N, D), lambda b, l: (b, 0, 0))

    in_specs = [
        tok_in_spec,
        _const_spec(params["patch_w"].shape),
        _const_spec(params["patch_b"].shape),
        _const_spec(params["pos"].shape),
        _layer_spec(params["ln1_g"].shape),
        _layer_spec(params["ln1_b"].shape),
        _layer_spec(params["qkv_w"].shape),
        _layer_spec(params["qkv_b"].shape),
        _layer_spec(params["proj_w"].shape),
        _layer_spec(params["proj_b"].shape),
        _layer_spec(params["ln2_g"].shape),
        _layer_spec(params["ln2_b"].shape),
        _layer_spec(params["fc1_w"].shape),
        _layer_spec(params["fc1_b"].shape),
        _layer_spec(params["fc2_w"].shape),
        _layer_spec(params["fc2_b"].shape),
        _const_spec(params["norm_g"].shape),
        _const_spec(params["norm_b"].shape),
    ]

    return pl.pallas_call(
        functools.partial(backbone_kernel, num_heads=num_heads),
        out_shape=jax.ShapeDtypeStruct((B, N, D), jnp.float32),
        grid=(B, depth),
        in_specs=in_specs,
        out_specs=tok_out_spec,
        scratch_shapes=[pltpu.VMEM((1, N, D), jnp.float32)],   # residual carry
        compiler_params=pltpu.CompilerParams(
            dimension_semantics=("parallel", "arbitrary"),
            # explicit budget; valid on v5e/v6e/v7x — re-derive for real
            # ViTPose-B shapes (esp. v7x's 64 MiB physical VMEM).
            vmem_limit_bytes=48 * 1024 * 1024,
        ),
    )(
        xp,
        params["patch_w"], params["patch_b"], params["pos"],
        params["ln1_g"], params["ln1_b"],
        params["qkv_w"], params["qkv_b"],
        params["proj_w"], params["proj_b"],
        params["ln2_g"], params["ln2_b"],
        params["fc1_w"], params["fc1_b"],
        params["fc2_w"], params["fc2_b"],
        params["norm_g"], params["norm_b"],
    )


# --------------------------- model (glue + params) ---------------------------

def init_params(key, *, in_ch, patch, embed_dim, depth, mlp_ratio, num_patches):
    P = in_ch * patch * patch
    Hd = embed_dim * mlp_ratio
    keys = jax.random.split(key, 2 + 4 * depth)

    def nrm(k, shape, dtype=jnp.bfloat16):
        return (0.02 * jax.random.normal(k, shape)).astype(dtype)

    qkv_w = jnp.stack([nrm(keys[2 + 4 * i + 0], (3, embed_dim, embed_dim))
                       for i in range(depth)])
    proj_w = jnp.stack([nrm(keys[2 + 4 * i + 1], (embed_dim, embed_dim))
                        for i in range(depth)])
    fc1_w = jnp.stack([nrm(keys[2 + 4 * i + 2], (embed_dim, Hd))
                       for i in range(depth)])
    fc2_w = jnp.stack([nrm(keys[2 + 4 * i + 3], (Hd, embed_dim))
                       for i in range(depth)])

    f32 = jnp.float32
    return {
        # patch embed (weights bf16 for the MXU, bias/pos f32)
        "patch_w": nrm(keys[0], (P, embed_dim)),
        "patch_b": jnp.zeros((1, embed_dim), f32),
        "pos": (0.02 * jax.random.normal(keys[1], (1, num_patches, embed_dim))
                ).astype(f32),
        # final norm
        "norm_g": jnp.ones((1, embed_dim), f32),
        "norm_b": jnp.zeros((1, embed_dim), f32),
        # stacked per-layer params (leading depth axis)
        "ln1_g": jnp.ones((depth, 1, embed_dim), f32),
        "ln1_b": jnp.zeros((depth, 1, embed_dim), f32),
        "qkv_w": qkv_w,                                      # (L, 3, D, D) bf16
        "qkv_b": jnp.zeros((depth, 3, 1, embed_dim), f32),
        "proj_w": proj_w,                                    # (L, D, D) bf16
        "proj_b": jnp.zeros((depth, 1, embed_dim), f32),
        "ln2_g": jnp.ones((depth, 1, embed_dim), f32),
        "ln2_b": jnp.zeros((depth, 1, embed_dim), f32),
        "fc1_w": fc1_w,                                      # (L, D, Hd) bf16
        "fc1_b": jnp.zeros((depth, 1, Hd), f32),
        "fc2_w": fc2_w,                                      # (L, Hd, D) bf16
        "fc2_b": jnp.zeros((depth, 1, embed_dim), f32),
    }


def vitpose_forward(x_nchw, params, *, patch, num_heads):
    B, C, Himg, Wimg = x_nchw.shape
    Hp, Wp = Himg // patch, Wimg // patch
    N = Hp * Wp

    # im2col for the stride=patch conv (PatchEmbed), NCHW -> (B, N, C*ps*ps)
    xp = x_nchw.reshape(B, C, Hp, patch, Wp, patch)
    xp = xp.transpose(0, 2, 4, 1, 3, 5).reshape(B, N, C * patch * patch)

    tok = vit_backbone(xp, params, num_heads=num_heads)

    # ViTPose backbone returns an NCHW feature map
    D = tok.shape[-1]
    return tok.transpose(0, 2, 1).reshape(B, D, Hp, Wp)


# ---------------------------------- main -------------------------------------

if __name__ == "__main__":
    # small synthetic config
    B, C, IMG, PATCH = 2, 4, 16, 4
    EMBED, DEPTH, HEADS, MLP_RATIO = 32, 2, 4, 2
    Hp = Wp = IMG // PATCH
    N = Hp * Wp

    key = jax.random.PRNGKey(0)
    kx, kp = jax.random.split(key)
    x = jax.random.normal(kx, (B, C, IMG, IMG), dtype=jnp.float32)

    params = init_params(kp, in_ch=C, patch=PATCH, embed_dim=EMBED,
                         depth=DEPTH, mlp_ratio=MLP_RATIO, num_patches=N)

    out = vitpose_forward(x, params, patch=PATCH, num_heads=HEADS)
    out = jax.block_until_ready(out)
    assert out.shape == (B, EMBED, Hp, Wp), out.shape
    print("KERNEL_OK")
</pallas_src>

<mosaic_0001>
module attributes {stable_mosaic.version = 11 : i64} {
  func.func @backbone_kernel(%arg0: i32, %arg1: i32, %arg2: memref<1x16x64xf32, #tpu.memory_space<vmem>>, %arg3: memref<64x32xbf16, #tpu.memory_space<vmem>>, %arg4: memref<1x32xf32, #tpu.memory_space<vmem>>, %arg5: memref<1x16x32xf32, #tpu.memory_space<vmem>>, %arg6: memref<1x1x32xf32, #tpu.memory_space<vmem>>, %arg7: memref<1x1x32xf32, #tpu.memory_space<vmem>>, %arg8: memref<1x3x32x32xbf16, #tpu.memory_space<vmem>>, %arg9: memref<1x3x1x32xf32, #tpu.memory_space<vmem>>, %arg10: memref<1x32x32xbf16, #tpu.memory_space<vmem>>, %arg11: memref<1x1x32xf32, #tpu.memory_space<vmem>>, %arg12: memref<1x1x32xf32, #tpu.memory_space<vmem>>, %arg13: memref<1x1x32xf32, #tpu.memory_space<vmem>>, %arg14: memref<1x32x64xbf16, #tpu.memory_space<vmem>>, %arg15: memref<1x1x64xf32, #tpu.memory_space<vmem>>, %arg16: memref<1x64x32xbf16, #tpu.memory_space<vmem>>, %arg17: memref<1x1x32xf32, #tpu.memory_space<vmem>>, %arg18: memref<1x32xf32, #tpu.memory_space<vmem>>, %arg19: memref<1x32xf32, #tpu.memory_space<vmem>>, %arg20: memref<1x16x32xf32, #tpu.memory_space<vmem>>, %arg21: memref<1x16x32xf32, #tpu.memory_space<vmem>>) attributes {dimension_semantics = [#tpu.dimension_semantics<parallel>, #tpu.dimension_semantics<arbitrary>], iteration_bounds = array<i64: 2, 2>, scalar_prefetch = 0 : i64, scratch_operands = 1 : i64, tpu.core_type = #tpu.core_type<tc>, window_params = [{transform_indices = @transform_0, window_bounds = array<i64: 1, 16, 64>}, {pipeline_mode = #tpu.pipeline_mode<synchronous>, transform_indices = @transform_1, window_bounds = array<i64: 64, 32>}, {pipeline_mode = #tpu.pipeline_mode<synchronous>, transform_indices = @transform_2, window_bounds = array<i64: 1, 32>}, {pipeline_mode = #tpu.pipeline_mode<synchronous>, transform_indices = @transform_3, window_bounds = array<i64: 1, 16, 32>}, {transform_indices = @transform_4, window_bounds = array<i64: 1, 1, 32>}, {transform_indices = @transform_5, window_bounds = array<i64: 1, 1, 32>}, {transform_indices = @transform_6, window_bounds = array<i64: 1, 3, 32, 32>}, {transform_indices = @transform_7, window_bounds = array<i64: 1, 3, 1, 32>}, {transform_indices = @transform_8, window_bounds = array<i64: 1, 32, 32>}, {transform_indices = @transform_9, window_bounds = array<i64: 1, 1, 32>}, {transform_indices = @transform_10, window_bounds = array<i64: 1, 1, 32>}, {transform_indices = @transform_11, window_bounds = array<i64: 1, 1, 32>}, {transform_indices = @transform_12, window_bounds = array<i64: 1, 32, 64>}, {transform_indices = @transform_13, window_bounds = array<i64: 1, 1, 64>}, {transform_indices = @transform_14, window_bounds = array<i64: 1, 64, 32>}, {transform_indices = @transform_15, window_bounds = array<i64: 1, 1, 32>}, {pipeline_mode = #tpu.pipeline_mode<synchronous>, transform_indices = @transform_16, window_bounds = array<i64: 1, 32>}, {pipeline_mode = #tpu.pipeline_mode<synchronous>, transform_indices = @transform_17, window_bounds = array<i64: 1, 32>}, {transform_indices = @transform_18, window_bounds = array<i64: 1, 16, 32>}]} {
    %c0_i32 = arith.constant 0 : i32
    %0 = arith.cmpi eq, %arg1, %c0_i32 : i32
    %1 = arith.extui %0 : i1 to i32
    %c0_i32_0 = arith.constant 0 : i32
    %2 = arith.cmpi ne, %1, %c0_i32_0 : i32
    scf.if %2 {
      %c0_69 = arith.constant 0 : index
      %c0_70 = arith.constant 0 : index
      %c0_71 = arith.constant 0 : index
      %154 = vector.load %arg2[%c0_69, %c0_70, %c0_71] : memref<1x16x64xf32, #tpu.memory_space<vmem>>, vector<1x16x64xf32>
      %155 = vector.shape_cast %154 : vector<1x16x64xf32> to vector<16x64xf32>
      %156 = arith.truncf %155 : vector<16x64xf32> to vector<16x64xbf16>
      %c0_72 = arith.constant 0 : index
      %c0_73 = arith.constant 0 : index
      %157 = vector.load %arg3[%c0_72, %c0_73] : memref<64x32xbf16, #tpu.memory_space<vmem>>, vector<64x32xbf16>
      %cst_74 = arith.constant dense<0.000000e+00> : vector<16x32xf32>
      %158 = tpu.matmul %156, %157, %cst_74 {dimension_numbers = #tpu.dot_dimension_numbers<[1], [0], [0], [1], [0, 0, 1, 1], [], []>} : vector<16x64xbf16>, vector<64x32xbf16>, vector<16x32xf32> -> vector<16x32xf32>
      %c0_75 = arith.constant 0 : index
      %c0_76 = arith.constant 0 : index
      %159 = vector.load %arg4[%c0_75, %c0_76] : memref<1x32xf32, #tpu.memory_space<vmem>>, vector<1x32xf32>
      %160 = vector.broadcast %159 : vector<1x32xf32> to vector<16x32xf32>
      %161 = arith.addf %158, %160 : vector<16x32xf32>
      %c0_77 = arith.constant 0 : index
      %c0_78 = arith.constant 0 : index
      %c0_79 = arith.constant 0 : index
      %162 = vector.load %arg5[%c0_77, %c0_78, %c0_79] : memref<1x16x32xf32, #tpu.memory_space<vmem>>, vector<1x16x32xf32>
      %163 = vector.shape_cast %162 : vector<1x16x32xf32> to vector<16x32xf32>
      %164 = arith.addf %161, %163 : vector<16x32xf32>
      %c0_80 = arith.constant 0 : index
      %c0_81 = arith.constant 0 : index
      %c0_82 = arith.constant 0 : index
      %165 = vector.load %arg21[%c0_80, %c0_81, %c0_82] : memref<1x16x32xf32, #tpu.memory_space<vmem>>, vector<1x16x32xf32>
      %166 = vector.shape_cast %165 : vector<1x16x32xf32> to vector<16x32xf32>
      %167 = vector.shape_cast %164 : vector<16x32xf32> to vector<1x16x32xf32>
      tpu.vector_store %arg21[%c0_80, %c0_81, %c0_82], %167 {strides = array<i32>} : memref<1x16x32xf32, #tpu.memory_space<vmem>>, vector<1x16x32xf32>,
    } else {
    }
    %c0 = arith.constant 0 : index
    %c0_1 = arith.constant 0 : index
    %c0_2 = arith.constant 0 : index
    %3 = vector.load %arg21[%c0, %c0_1, %c0_2] : memref<1x16x32xf32, #tpu.memory_space<vmem>>, vector<1x16x32xf32>
    %4 = vector.shape_cast %3 : vector<1x16x32xf32> to vector<16x32xf32>
    %c0_3 = arith.constant 0 : index
    %c0_4 = arith.constant 0 : index
    %c0_5 = arith.constant 0 : index
    %5 = vector.load %arg6[%c0_3, %c0_4, %c0_5] : memref<1x1x32xf32, #tpu.memory_space<vmem>>, vector<1x1x32xf32>
    %6 = vector.shape_cast %5 : vector<1x1x32xf32> to vector<1x32xf32>
    %c0_6 = arith.constant 0 : index
    %c0_7 = arith.constant 0 : index
    %c0_8 = arith.constant 0 : index
    %7 = vector.load %arg7[%c0_6, %c0_7, %c0_8] : memref<1x1x32xf32, #tpu.memory_space<vmem>>, vector<1x1x32xf32>
    %8 = vector.shape_cast %7 : vector<1x1x32xf32> to vector<1x32xf32>
    %cst = arith.constant dense<0.000000e+00> : vector<16xf32>
    %9 = vector.multi_reduction <add>, %4, %cst [1] : vector<16x32xf32> to vector<16xf32>
    %10 = vector.shape_cast %9 : vector<16xf32> to vector<16x1xf32>
    %cst_9 = arith.constant 3.200000e+01 : f32
    %11 = vector.broadcast %cst_9 : f32 to vector<16x1xf32>
    %12 = arith.divf %10, %11 : vector<16x1xf32>
    %13 = vector.broadcast %12 : vector<16x1xf32> to vector<16x32xf32>
    %14 = arith.subf %4, %13 : vector<16x32xf32>
    %15 = arith.mulf %14, %14 : vector<16x32xf32>
    %cst_10 = arith.constant dense<0.000000e+00> : vector<16xf32>
    %16 = vector.multi_reduction <add>, %15, %cst_10 [1] : vector<16x32xf32> to vector<16xf32>
    %17 = vector.shape_cast %16 : vector<16xf32> to vector<16x1xf32>
    %cst_11 = arith.constant 3.200000e+01 : f32
    %18 = vector.broadcast %cst_11 : f32 to vector<16x1xf32>
    %19 = arith.divf %17, %18 : vector<16x1xf32>
    %20 = vector.broadcast %12 : vector<16x1xf32> to vector<16x32xf32>
    %21 = arith.subf %4, %20 : vector<16x32xf32>
    %cst_12 = arith.constant 9.99999997E-7 : f32
    %22 = vector.broadcast %cst_12 : f32 to vector<16x1xf32>
    %23 = arith.addf %19, %22 : vector<16x1xf32>
    %24 = math.rsqrt %23 : vector<16x1xf32>
    %25 = vector.broadcast %24 : vector<16x1xf32> to vector<16x32xf32>
    %26 = arith.mulf %21, %25 : vector<16x32xf32>
    %27 = vector.broadcast %6 : vector<1x32xf32> to vector<16x32xf32>
    %28 = arith.mulf %26, %27 : vector<16x32xf32>
    %29 = vector.broadcast %8 : vector<1x32xf32> to vector<16x32xf32>
    %30 = arith.addf %28, %29 : vector<16x32xf32>
    %31 = arith.truncf %30 : vector<16x32xf32> to vector<16x32xbf16>
    %c0_13 = arith.constant 0 : index
    %c0_14 = arith.constant 0 : index
    %c0_15 = arith.constant 0 : index
    %c0_16 = arith.constant 0 : index
    %32 = vector.load %arg8[%c0_13, %c0_14, %c0_15, %c0_16] : memref<1x3x32x32xbf16, #tpu.memory_space<vmem>>, vector<1x3x32x32xbf16>
    %33 = vector.shape_cast %32 : vector<1x3x32x32xbf16> to vector<3x32x32xbf16>
    %c0_17 = arith.constant 0 : index
    %c0_18 = arith.constant 0 : index
    %c0_19 = arith.constant 0 : index
    %c0_20 = arith.constant 0 : index
    %34 = vector.load %arg9[%c0_17, %c0_18, %c0_19, %c0_20] : memref<1x3x1x32xf32, #tpu.memory_space<vmem>>, vector<1x3x1x32xf32>
    %35 = vector.shape_cast %34 : vector<1x3x1x32xf32> to vector<3x1x32xf32>
    %36 = vector.extract_strided_slice %33 {offsets = [0, 0, 0], sizes = [1, 32, 32], strides = [1, 1, 1]} : vector<3x32x32xbf16> to vector<1x32x32xbf16>
    %37 = vector.shape_cast %36 : vector<1x32x32xbf16> to vector<32x32xbf16>
    %cst_21 = arith.constant dense<0.000000e+00> : vector<16x32xf32>
    %38 = tpu.matmul %31, %37, %cst_21 {dimension_numbers = #tpu.dot_dimension_numbers<[1], [0], [0], [1], [0, 0, 1, 1], [], []>} : vector<16x32xbf16>, vector<32x32xbf16>, vector<16x32xf32> -> vector<16x32xf32>
    %39 = vector.extract_strided_slice %35 {offsets = [0, 0, 0], sizes = [1, 1, 32], strides = [1, 1, 1]} : vector<3x1x32xf32> to vector<1x1x32xf32>
    %40 = vector.shape_cast %39 : vector<1x1x32xf32> to vector<1x32xf32>
    %41 = vector.broadcast %40 : vector<1x32xf32> to vector<16x32xf32>
    %42 = arith.addf %38, %41 : vector<16x32xf32>
    %43 = vector.extract_strided_slice %33 {offsets = [1, 0, 0], sizes = [1, 32, 32], strides = [1, 1, 1]} : vector<3x32x32xbf16> to vector<1x32x32xbf16>
    %44 = vector.shape_cast %43 : vector<1x32x32xbf16> to vector<32x32xbf16>
    %cst_22 = arith.constant dense<0.000000e+00> : vector<16x32xf32>
    %45 = tpu.matmul %31, %44, %cst_22 {dimension_numbers = #tpu.dot_dimension_numbers<[1], [0], [0], [1], [0, 0, 1, 1], [], []>} : vector<16x32xbf16>, vector<32x32xbf16>, vector<16x32xf32> -> vector<16x32xf32>
    %46 = vector.extract_strided_slice %35 {offsets = [1, 0, 0], sizes = [1, 1, 32], strides = [1, 1, 1]} : vector<3x1x32xf32> to vector<1x1x32xf32>
    %47 = vector.shape_cast %46 : vector<1x1x32xf32> to vector<1x32xf32>
    %48 = vector.broadcast %47 : vector<1x32xf32> to vector<16x32xf32>
    %49 = arith.addf %45, %48 : vector<16x32xf32>
    %50 = vector.extract_strided_slice %33 {offsets = [2, 0, 0], sizes = [1, 32, 32], strides = [1, 1, 1]} : vector<3x32x32xbf16> to vector<1x32x32xbf16>
    %51 = vector.shape_cast %50 : vector<1x32x32xbf16> to vector<32x32xbf16>
    %cst_23 = arith.constant dense<0.000000e+00> : vector<16x32xf32>
    %52 = tpu.matmul %31, %51, %cst_23 {dimension_numbers = #tpu.dot_dimension_numbers<[1], [0], [0], [1], [0, 0, 1, 1], [], []>} : vector<16x32xbf16>, vector<32x32xbf16>, vector<16x32xf32> -> vector<16x32xf32>
    %53 = vector.extract_strided_slice %35 {offsets = [2, 0, 0], sizes = [1, 1, 32], strides = [1, 1, 1]} : vector<3x1x32xf32> to vector<1x1x32xf32>
    %54 = vector.shape_cast %53 : vector<1x1x32xf32> to vector<1x32xf32>
    %55 = vector.broadcast %54 : vector<1x32xf32> to vector<16x32xf32>
    %56 = arith.addf %52, %55 : vector<16x32xf32>
    %cst_24 = arith.constant 0.353553385 : f32
    %57 = vector.broadcast %cst_24 : f32 to vector<16x32xf32>
    %58 = arith.mulf %42, %57 : vector<16x32xf32>
    %59 = vector.shape_cast %58 : vector<16x32xf32> to vector<16x4x8xf32>
    %60 = tpu.transpose %59, [1, 0, 2] : vector<16x4x8xf32> -> vector<4x16x8xf32>
    %61 = arith.truncf %60 : vector<4x16x8xf32> to vector<4x16x8xbf16>
    %62 = vector.shape_cast %49 : vector<16x32xf32> to vector<16x4x8xf32>
    %63 = tpu.transpose %62, [1, 0, 2] : vector<16x4x8xf32> -> vector<4x16x8xf32>
    %64 = arith.truncf %63 : vector<4x16x8xf32> to vector<4x16x8xbf16>
    %65 = vector.shape_cast %56 : vector<16x32xf32> to vector<16x4x8xf32>
    %66 = tpu.transpose %65, [1, 0, 2] : vector<16x4x8xf32> -> vector<4x16x8xf32>
    %67 = arith.truncf %66 : vector<4x16x8xf32> to vector<4x16x8xbf16>
    "tpu.trace_start"() <{level = 10 : i32, message = "hqd,hkd->hqk"}> : () -> ()
    %cst_25 = arith.constant dense<0.000000e+00> : vector<4x16x16xf32>
    %68 = tpu.matmul %61, %64, %cst_25 {dimension_numbers = #tpu.dot_dimension_numbers<[2], [2], [1], [1], [0, 0, 0, 1, 1, 1], [0], [0]>} : vector<4x16x8xbf16>, vector<4x16x8xbf16>, vector<4x16x16xf32> -> vector<4x16x16xf32>
    "tpu.trace_stop"() : () -> ()
    %cst_26 = arith.constant dense<0xFF800000> : vector<4x16xf32>
    %69 = vector.multi_reduction <maximumf>, %68, %cst_26 [2] : vector<4x16x16xf32> to vector<4x16xf32>
    %70 = vector.shape_cast %69 : vector<4x16xf32> to vector<4x16x1xf32>
    %71 = vector.broadcast %70 : vector<4x16x1xf32> to vector<4x16x16xf32>
    %72 = arith.subf %68, %71 : vector<4x16x16xf32>
    %73 = math.exp %72 : vector<4x16x16xf32>
    %cst_27 = arith.constant dense<0.000000e+00> : vector<4x16xf32>
    %74 = vector.multi_reduction <add>, %73, %cst_27 [2] : vector<4x16x16xf32> to vector<4x16xf32>
    %75 = vector.shape_cast %74 : vector<4x16xf32> to vector<4x16x1xf32>
    %76 = tpu.reciprocal %75 {approx = true} : vector<4x16x1xf32> -> vector<4x16x1xf32>
    %77 = vector.broadcast %76 : vector<4x16x1xf32> to vector<4x16x16xf32>
    %78 = arith.mulf %73, %77 : vector<4x16x16xf32>
    %79 = arith.truncf %78 : vector<4x16x16xf32> to vector<4x16x16xbf16>
    "tpu.trace_start"() <{level = 10 : i32, message = "hqk,hkd->hqd"}> : () -> ()
    %cst_28 = arith.constant dense<0.000000e+00> : vector<4x16x8xf32>
    %80 = tpu.matmul %79, %67, %cst_28 {dimension_numbers = #tpu.dot_dimension_numbers<[2], [1], [1], [2], [0, 0, 0, 1, 1, 2], [0], [0]>} : vector<4x16x16xbf16>, vector<4x16x8xbf16>, vector<4x16x8xf32> -> vector<4x16x8xf32>
    "tpu.trace_stop"() : () -> ()
    %81 = tpu.transpose %80, [1, 0, 2] : vector<4x16x8xf32> -> vector<16x4x8xf32>
    %82 = vector.shape_cast %81 : vector<16x4x8xf32> to vector<16x32xf32>
    %83 = arith.truncf %82 : vector<16x32xf32> to vector<16x32xbf16>
    %c0_29 = arith.constant 0 : index
    %c0_30 = arith.constant 0 : index
    %c0_31 = arith.constant 0 : index
    %84 = vector.load %arg10[%c0_29, %c0_30, %c0_31] : memref<1x32x32xbf16, #tpu.memory_space<vmem>>, vector<1x32x32xbf16>
    %85 = vector.shape_cast %84 : vector<1x32x32xbf16> to vector<32x32xbf16>
    %cst_32 = arith.constant dense<0.000000e+00> : vector<16x32xf32>
    %86 = tpu.matmul %83, %85, %cst_32 {dimension_numbers = #tpu.dot_dimension_numbers<[1], [0], [0], [1], [0, 0, 1, 1], [], []>} : vector<16x32xbf16>, vector<32x32xbf16>, vector<16x32xf32> -> vector<16x32xf32>
    %c0_33 = arith.constant 0 : index
    %c0_34 = arith.constant 0 : index
    %c0_35 = arith.constant 0 : index
    %87 = vector.load %arg11[%c0_33, %c0_34, %c0_35] : memref<1x1x32xf32, #tpu.memory_space<vmem>>, vector<1x1x32xf32>
    %88 = vector.shape_cast %87 : vector<1x1x32xf32> to vector<1x32xf32>
    %89 = vector.broadcast %88 : vector<1x32xf32> to vector<16x32xf32>
    %90 = arith.addf %86, %89 : vector<16x32xf32>
    %91 = arith.addf %4, %90 : vector<16x32xf32>
    %c0_36 = arith.constant 0 : index
    %c0_37 = arith.constant 0 : index
    %c0_38 = arith.constant 0 : index
    %92 = vector.load %arg12[%c0_36, %c0_37, %c0_38] : memref<1x1x32xf32, #tpu.memory_space<vmem>>, vector<1x1x32xf32>
    %93 = vector.shape_cast %92 : vector<1x1x32xf32> to vector<1x32xf32>
    %c0_39 = arith.constant 0 : index
    %c0_40 = arith.constant 0 : index
    %c0_41 = arith.constant 0 : index
    %94 = vector.load %arg13[%c0_39, %c0_40, %c0_41] : memref<1x1x32xf32, #tpu.memory_space<vmem>>, vector<1x1x32xf32>
    %95 = vector.shape_cast %94 : vector<1x1x32xf32> to vector<1x32xf32>
    %cst_42 = arith.constant dense<0.000000e+00> : vector<16xf32>
    %96 = vector.multi_reduction <add>, %91, %cst_42 [1] : vector<16x32xf32> to vector<16xf32>
    %97 = vector.shape_cast %96 : vector<16xf32> to vector<16x1xf32>
    %cst_43 = arith.constant 3.200000e+01 : f32
    %98 = vector.broadcast %cst_43 : f32 to vector<16x1xf32>
    %99 = arith.divf %97, %98 : vector<16x1xf32>
    %100 = vector.broadcast %99 : vector<16x1xf32> to vector<16x32xf32>
    %101 = arith.subf %91, %100 : vector<16x32xf32>
    %102 = arith.mulf %101, %101 : vector<16x32xf32>
    %cst_44 = arith.constant dense<0.000000e+00> : vector<16xf32>
    %103 = vector.multi_reduction <add>, %102, %cst_44 [1] : vector<16x32xf32> to vector<16xf32>
    %104 = vector.shape_cast %103 : vector<16xf32> to vector<16x1xf32>
    %cst_45 = arith.constant 3.200000e+01 : f32
    %105 = vector.broadcast %cst_45 : f32 to vector<16x1xf32>
    %106 = arith.divf %104, %105 : vector<16x1xf32>
    %107 = vector.broadcast %99 : vector<16x1xf32> to vector<16x32xf32>
    %108 = arith.subf %91, %107 : vector<16x32xf32>
    %cst_46 = arith.constant 9.99999997E-7 : f32
    %109 = vector.broadcast %cst_46 : f32 to vector<16x1xf32>
    %110 = arith.addf %106, %109 : vector<16x1xf32>
    %111 = math.rsqrt %110 : vector<16x1xf32>
    %112 = vector.broadcast %111 : vector<16x1xf32> to vector<16x32xf32>
    %113 = arith.mulf %108, %112 : vector<16x32xf32>
    %114 = vector.broadcast %93 : vector<1x32xf32> to vector<16x32xf32>
    %115 = arith.mulf %113, %114 : vector<16x32xf32>
    %116 = vector.broadcast %95 : vector<1x32xf32> to vector<16x32xf32>
    %117 = arith.addf %115, %116 : vector<16x32xf32>
    %118 = arith.truncf %117 : vector<16x32xf32> to vector<16x32xbf16>
    %c0_47 = arith.constant 0 : index
    %c0_48 = arith.constant 0 : index
    %c0_49 = arith.constant 0 : index
    %119 = vector.load %arg14[%c0_47, %c0_48, %c0_49] : memref<1x32x64xbf16, #tpu.memory_space<vmem>>, vector<1x32x64xbf16>
    %120 = vector.shape_cast %119 : vector<1x32x64xbf16> to vector<32x64xbf16>
    %cst_50 = arith.constant dense<0.000000e+00> : vector<16x64xf32>
    %121 = tpu.matmul %118, %120, %cst_50 {dimension_numbers = #tpu.dot_dimension_numbers<[1], [0], [0], [1], [0, 0, 1, 1], [], []>} : vector<16x32xbf16>, vector<32x64xbf16>, vector<16x64xf32> -> vector<16x64xf32>
    %c0_51 = arith.constant 0 : index
    %c0_52 = arith.constant 0 : index
    %c0_53 = arith.constant 0 : index
    %122 = vector.load %arg15[%c0_51, %c0_52, %c0_53] : memref<1x1x64xf32, #tpu.memory_space<vmem>>, vector<1x1x64xf32>
    %123 = vector.shape_cast %122 : vector<1x1x64xf32> to vector<1x64xf32>
    %124 = vector.broadcast %123 : vector<1x64xf32> to vector<16x64xf32>
    %125 = arith.addf %121, %124 : vector<16x64xf32>
    %126 = arith.mulf %125, %125 : vector<16x64xf32>
    %127 = arith.mulf %125, %126 : vector<16x64xf32>
    %cst_54 = arith.constant 4.471500e-02 : f32
    %128 = vector.broadcast %cst_54 : f32 to vector<16x64xf32>
    %129 = arith.mulf %128, %127 : vector<16x64xf32>
    %130 = arith.addf %125, %129 : vector<16x64xf32>
    %cst_55 = arith.constant 0.797884583 : f32
    %131 = vector.broadcast %cst_55 : f32 to vector<16x64xf32>
    %132 = arith.mulf %131, %130 : vector<16x64xf32>
    %133 = math.tanh %132 : vector<16x64xf32>
    %cst_56 = arith.constant 1.000000e+00 : f32
    %134 = vector.broadcast %cst_56 : f32 to vector<16x64xf32>
    %135 = arith.addf %134, %133 : vector<16x64xf32>
    %cst_57 = arith.constant 5.000000e-01 : f32
    %136 = vector.broadcast %cst_57 : f32 to vector<16x64xf32>
    %137 = arith.mulf %136, %135 : vector<16x64xf32>
    %138 = arith.mulf %125, %137 : vector<16x64xf32>
    %139 = arith.truncf %138 : vector<16x64xf32> to vector<16x64xbf16>
    %c0_58 = arith.constant 0 : index
    %c0_59 = arith.constant 0 : index
    %c0_60 = arith.constant 0 : index
    %140 = vector.load %arg16[%c0_58, %c0_59, %c0_60] : memref<1x64x32xbf16, #tpu.memory_space<vmem>>, vector<1x64x32xbf16>
    %141 = vector.shape_cast %140 : vector<1x64x32xbf16> to vector<64x32xbf16>
    %cst_61 = arith.constant dense<0.000000e+00> : vector<16x32xf32>
    %142 = tpu.matmul %139, %141, %cst_61 {dimension_numbers = #tpu.dot_dimension_numbers<[1], [0], [0], [1], [0, 0, 1, 1], [], []>} : vector<16x64xbf16>, vector<64x32xbf16>, vector<16x32xf32> -> vector<16x32xf32>
    %c0_62 = arith.constant 0 : index
    %c0_63 = arith.constant 0 : index
    %c0_64 = arith.constant 0 : index
    %143 = vector.load %arg17[%c0_62, %c0_63, %c0_64] : memref<1x1x32xf32, #tpu.memory_space<vmem>>, vector<1x1x32xf32>
    %144 = vector.shape_cast %143 : vector<1x1x32xf32> to vector<1x32xf32>
    %145 = vector.broadcast %144 : vector<1x32xf32> to vector<16x32xf32>
    %146 = arith.addf %142, %145 : vector<16x32xf32>
    %147 = arith.addf %91, %146 : vector<16x32xf32>
    %c0_65 = arith.constant 0 : index
    %c0_66 = arith.constant 0 : index
    %c0_67 = arith.constant 0 : index
    %148 = vector.load %arg21[%c0_65, %c0_66, %c0_67] : memref<1x16x32xf32, #tpu.memory_space<vmem>>, vector<1x16x32xf32>
    %149 = vector.shape_cast %148 : vector<1x16x32xf32> to vector<16x32xf32>
    %150 = vector.shape_cast %147 : vector<16x32xf32> to vector<1x16x32xf32>
    tpu.vector_store %arg21[%c0_65, %c0_66, %c0_67], %150 {strides = array<i32>} : memref<1x16x32xf32, #tpu.memory_space<vmem>>, vector<1x16x32xf32>,
    %c1_i32 = arith.constant 1 : i32
    %151 = arith.cmpi eq, %arg1, %c1_i32 : i32
    %152 = arith.extui %151 : i1 to i32
    %c0_i32_68 = arith.constant 0 : i32
    %153 = arith.cmpi ne, %152, %c0_i32_68 : i32
    scf.if %153 {
      %c0_69 = arith.constant 0 : index
      %c0_70 = arith.constant 0 : index
      %154 = vector.load %arg18[%c0_69, %c0_70] : memref<1x32xf32, #tpu.memory_space<vmem>>, vector<1x32xf32>
      %c0_71 = arith.constant 0 : index
      %c0_72 = arith.constant 0 : index
      %155 = vector.load %arg19[%c0_71, %c0_72] : memref<1x32xf32, #tpu.memory_space<vmem>>, vector<1x32xf32>
      %cst_73 = arith.constant dense<0.000000e+00> : vector<16xf32>
      %156 = vector.multi_reduction <add>, %147, %cst_73 [1] : vector<16x32xf32> to vector<16xf32>
      %157 = vector.shape_cast %156 : vector<16xf32> to vector<16x1xf32>
      %cst_74 = arith.constant 3.200000e+01 : f32
      %158 = vector.broadcast %cst_74 : f32 to vector<16x1xf32>
      %159 = arith.divf %157, %158 : vector<16x1xf32>
      %160 = vector.broadcast %159 : vector<16x1xf32> to vector<16x32xf32>
      %161 = arith.subf %147, %160 : vector<16x32xf32>
      %162 = arith.mulf %161, %161 : vector<16x32xf32>
      %cst_75 = arith.constant dense<0.000000e+00> : vector<16xf32>
      %163 = vector.multi_reduction <add>, %162, %cst_75 [1] : vector<16x32xf32> to vector<16xf32>
      %164 = vector.shape_cast %163 : vector<16xf32> to vector<16x1xf32>
      %cst_76 = arith.constant 3.200000e+01 : f32
      %165 = vector.broadcast %cst_76 : f32 to vector<16x1xf32>
      %166 = arith.divf %164, %165 : vector<16x1xf32>
      %167 = vector.broadcast %159 : vector<16x1xf32> to vector<16x32xf32>
      %168 = arith.subf %147, %167 : vector<16x32xf32>
      %cst_77 = arith.constant 9.99999997E-7 : f32
      %169 = vector.broadcast %cst_77 : f32 to vector<16x1xf32>
      %170 = arith.addf %166, %169 : vector<16x1xf32>
      %171 = math.rsqrt %170 : vector<16x1xf32>
      %172 = vector.broadcast %171 : vector<16x1xf32> to vector<16x32xf32>
      %173 = arith.mulf %168, %172 : vector<16x32xf32>
      %174 = vector.broadcast %154 : vector<1x32xf32> to vector<16x32xf32>
      %175 = arith.mulf %173, %174 : vector<16x32xf32>
      %176 = vector.broadcast %155 : vector<1x32xf32> to vector<16x32xf32>
      %177 = arith.addf %175, %176 : vector<16x32xf32>
      %c0_78 = arith.constant 0 : index
      %c0_79 = arith.constant 0 : index
      %c0_80 = arith.constant 0 : index
      %178 = vector.load %arg20[%c0_78, %c0_79, %c0_80] : memref<1x16x32xf32, #tpu.memory_space<vmem>>, vector<1x16x32xf32>
      %179 = vector.shape_cast %178 : vector<1x16x32xf32> to vector<16x32xf32>
      %180 = vector.shape_cast %177 : vector<16x32xf32> to vector<1x16x32xf32>
      tpu.vector_store %arg20[%c0_78, %c0_79, %c0_80], %180 {strides = array<i32>} : memref<1x16x32xf32, #tpu.memory_space<vmem>>, vector<1x16x32xf32>,
    } else {
    }
    return
  }
  func.func @transform_0(%arg0: i32, %arg1: i32) -> (i32, i32, i32) {
    %c0_i32 = arith.constant 0 : i32
    %c0_i32_0 = arith.constant 0 : i32
    %c0_i32_1 = arith.constant 0 : i32
    return %arg0, %c0_i32, %c0_i32_0 : i32, i32, i32
  }
  func.func @transform_1(%arg0: i32, %arg1: i32) -> (i32, i32) {
    %c0_i32 = arith.constant 0 : i32
    %c0_i32_0 = arith.constant 0 : i32
    %c0_i32_1 = arith.constant 0 : i32
    return %c0_i32, %c0_i32_0 : i32, i32
  }
  func.func @transform_2(%arg0: i32, %arg1: i32) -> (i32, i32) {
    %c0_i32 = arith.constant 0 : i32
    %c0_i32_0 = arith.constant 0 : i32
    %c0_i32_1 = arith.constant 0 : i32
    return %c0_i32, %c0_i32_0 : i32, i32
  }
  func.func @transform_3(%arg0: i32, %arg1: i32) -> (i32, i32, i32) {
    %c0_i32 = arith.constant 0 : i32
    %c0_i32_0 = arith.constant 0 : i32
    %c0_i32_1 = arith.constant 0 : i32
    %c0_i32_2 = arith.constant 0 : i32
    return %c0_i32, %c0_i32_0, %c0_i32_1 : i32, i32, i32
  }
  func.func @transform_4(%arg0: i32, %arg1: i32) -> (i32, i32, i32) {
    %c0_i32 = arith.constant 0 : i32
    %c0_i32_0 = arith.constant 0 : i32
    %c0_i32_1 = arith.constant 0 : i32
    return %arg1, %c0_i32, %c0_i32_0 : i32, i32, i32
  }
  func.func @transform_5(%arg0: i32, %arg1: i32) -> (i32, i32, i32) {
    %c0_i32 = arith.constant 0 : i32
    %c0_i32_0 = arith.constant 0 : i32
    %c0_i32_1 = arith.constant 0 : i32
    return %arg1, %c0_i32, %c0_i32_0 : i32, i32, i32
  }
  func.func @transform_6(%arg0: i32, %arg1: i32) -> (i32, i32, i32, i32) {
    %c0_i32 = arith.constant 0 : i32
    %c0_i32_0 = arith.constant 0 : i32
    %c0_i32_1 = arith.constant 0 : i32
    %c0_i32_2 = arith.constant 0 : i32
    return %arg1, %c0_i32, %c0_i32_0, %c0_i32_1 : i32, i32, i32, i32
  }
  func.func @transform_7(%arg0: i32, %arg1: i32) -> (i32, i32, i32, i32) {
    %c0_i32 = arith.constant 0 : i32
    %c0_i32_0 = arith.constant 0 : i32
    %c0_i32_1 = arith.constant 0 : i32
    %c0_i32_2 = arith.constant 0 : i32
    return %arg1, %c0_i32, %c0_i32_0, %c0_i32_1 : i32, i32, i32, i32
  }
  func.func @transform_8(%arg0: i32, %arg1: i32) -> (i32, i32, i32) {
    %c0_i32 = arith.constant 0 : i32
    %c0_i32_0 = arith.constant 0 : i32
    %c0_i32_1 = arith.constant 0 : i32
    return %arg1, %c0_i32, %c0_i32_0 : i32, i32, i32
  }
  func.func @transform_9(%arg0: i32, %arg1: i32) -> (i32, i32, i32) {
    %c0_i32 = arith.constant 0 : i32
    %c0_i32_0 = arith.constant 0 : i32
    %c0_i32_1 = arith.constant 0 : i32
    return %arg1, %c0_i32, %c0_i32_0 : i32, i32, i32
  }
  func.func @transform_10(%arg0: i32, %arg1: i32) -> (i32, i32, i32) {
    %c0_i32 = arith.constant 0 : i32
    %c0_i32_0 = arith.constant 0 : i32
    %c0_i32_1 = arith.constant 0 : i32
    return %arg1, %c0_i32, %c0_i32_0 : i32, i32, i32
  }
  func.func @transform_11(%arg0: i32, %arg1: i32) -> (i32, i32, i32) {
    %c0_i32 = arith.constant 0 : i32
    %c0_i32_0 = arith.constant 0 : i32
    %c0_i32_1 = arith.constant 0 : i32
    return %arg1, %c0_i32, %c0_i32_0 : i32, i32, i32
  }
  func.func @transform_12(%arg0: i32, %arg1: i32) -> (i32, i32, i32) {
    %c0_i32 = arith.constant 0 : i32
    %c0_i32_0 = arith.constant 0 : i32
    %c0_i32_1 = arith.constant 0 : i32
    return %arg1, %c0_i32, %c0_i32_0 : i32, i32, i32
  }
  func.func @transform_13(%arg0: i32, %arg1: i32) -> (i32, i32, i32) {
    %c0_i32 = arith.constant 0 : i32
    %c0_i32_0 = arith.constant 0 : i32
    %c0_i32_1 = arith.constant 0 : i32
    return %arg1, %c0_i32, %c0_i32_0 : i32, i32, i32
  }
  func.func @transform_14(%arg0: i32, %arg1: i32) -> (i32, i32, i32) {
    %c0_i32 = arith.constant 0 : i32
    %c0_i32_0 = arith.constant 0 : i32
    %c0_i32_1 = arith.constant 0 : i32
    return %arg1, %c0_i32, %c0_i32_0 : i32, i32, i32
  }
  func.func @transform_15(%arg0: i32, %arg1: i32) -> (i32, i32, i32) {
    %c0_i32 = arith.constant 0 : i32
    %c0_i32_0 = arith.constant 0 : i32
    %c0_i32_1 = arith.constant 0 : i32
    return %arg1, %c0_i32, %c0_i32_0 : i32, i32, i32
  }
  func.func @transform_16(%arg0: i32, %arg1: i32) -> (i32, i32) {
    %c0_i32 = arith.constant 0 : i32
    %c0_i32_0 = arith.constant 0 : i32
    %c0_i32_1 = arith.constant 0 : i32
    return %c0_i32, %c0_i32_0 : i32, i32
  }
  func.func @transform_17(%arg0: i32, %arg1: i32) -> (i32, i32) {
    %c0_i32 = arith.constant 0 : i32
    %c0_i32_0 = arith.constant 0 : i32
    %c0_i32_1 = arith.constant 0 : i32
    return %c0_i32, %c0_i32_0 : i32, i32
  }
  func.func @transform_18(%arg0: i32, %arg1: i32) -> (i32, i32, i32) {
    %c0_i32 = arith.constant 0 : i32
    %c0_i32_0 = arith.constant 0 : i32
    %c0_i32_1 = arith.constant 0 : i32
    return %arg0, %c0_i32, %c0_i32_0 : i32, i32, i32
  }
}

</mosaic_0001>

<llo_original>
// kernel: tpu_custom_call.1
$region0: #{tpu_custom_call.1}
  #allocation0 [shape = 'u32[]', space=smem, size = 0x4, offset = 0x4, fixed_abs, tag = 'smem constant byte address 0x4 - core index']
  #allocation1 [shape = 'u32[72,128]{1,0:T(1,128)}', space=vmem, size = 0x9000, scoped, tag = 'internal scratch']
  #allocation2 [shape = 'f32[1,16,32]{2,1,0:T(8,128)}', space=vmem, size = 0x2000, scoped, tag = 'scratch operand']
  %s0 = inlined_call_operand.hbm [shape: f32[2,16,64], index: 0, kind: input, shape index: {}]
  %s1 = inlined_call_operand.vmem [shape: bf16[64,32], index: 1, kind: input, shape index: {}]
  %s2 = inlined_call_operand.vmem [shape: f32[1,32], index: 2, kind: input, shape index: {}]
  %s3 = inlined_call_operand.vmem [shape: f32[1,16,32], index: 3, kind: input, shape index: {}]
  %s4 = inlined_call_operand.vmem [shape: f32[2,1,32], index: 4, kind: input, shape index: {}]
  %s5 = inlined_call_operand.vmem [shape: f32[2,1,32], index: 5, kind: input, shape index: {}]
  %s6 = inlined_call_operand.vmem [shape: bf16[2,3,32,32], index: 6, kind: input, shape index: {}]
  %s7 = inlined_call_operand.vmem [shape: f32[2,3,1,32], index: 7, kind: input, shape index: {}]
  %s8 = inlined_call_operand.hbm [shape: bf16[2,32,32], index: 8, kind: input, shape index: {}]
  %s9 = inlined_call_operand.vmem [shape: f32[2,1,32], index: 9, kind: input, shape index: {}]
  %s10 = inlined_call_operand.hbm [shape: f32[2,1,32], index: 10, kind: input, shape index: {}]
  %s11 = inlined_call_operand.hbm [shape: f32[2,1,32], index: 11, kind: input, shape index: {}]
  %s12 = inlined_call_operand.hbm [shape: bf16[2,32,64], index: 12, kind: input, shape index: {}]
  %s13 = inlined_call_operand.hbm [shape: f32[2,1,64], index: 13, kind: input, shape index: {}]
  %s14 = inlined_call_operand.vmem [shape: bf16[2,64,32], index: 14, kind: input, shape index: {}]
  %s15 = inlined_call_operand.hbm [shape: f32[2,1,32], index: 15, kind: input, shape index: {}]
  %s16 = inlined_call_operand.vmem [shape: f32[1,32], index: 16, kind: input, shape index: {}]
  %s17 = inlined_call_operand.vmem [shape: f32[1,32], index: 17, kind: input, shape index: {}]
  %s18 = inlined_call_operand.hbm [shape: f32[2,16,32], index: 18, kind: output, shape index: {}]
  %s19 = sld [smem:[#allocation0]]
  $region141: #{tpu_custom_call.1} parent=0
    _
  %s21 = ssub.s32 1, %s19
  %s22 = scalar_select 0, %s21, %s19
  $region1: #{tpu_custom_call.1} parent=0
    #allocation3 [shape = 'u8[16384]{0}', space=vmem, size = 0x4000, scoped, tag = 'input window, operand 0']
    #allocation4 [shape = 's32[2]{0}', space=sflag, size = 0x8, scoped, tag = 'scoped memory for tpu_custom_call.1']
    #allocation5 [shape = 's32[2]{0}', space=sflag, size = 0x8, scoped, tag = 'scoped memory for tpu_custom_call.1']
    #allocation6 [shape = 'u8[16384]{0}', space=vmem, size = 0x4000, scoped, tag = 'input window, operand 8']
    #allocation7 [shape = 's32[2]{0}', space=sflag, size = 0x8, scoped, tag = 'scoped memory for tpu_custom_call.1']
    #allocation8 [shape = 'u8[1024]{0}', space=vmem, size = 0x400, scoped, tag = 'input window, operand 10']
    #allocation9 [shape = 'u8[1024]{0}', space=vmem, size = 0x400, scoped, tag = 'input window, operand 11']
    #allocation10 [shape = 's32[2]{0}', space=sflag, size = 0x8, scoped, tag = 'scoped memory for tpu_custom_call.1']
    #allocation11 [shape = 'u8[16384]{0}', space=vmem, size = 0x4000, scoped, tag = 'input window, operand 12']
    #allocation12 [shape = 'u8[1024]{0}', space=vmem, size = 0x400, scoped, tag = 'input window, operand 13']
    #allocation13 [shape = 's32[2]{0}', space=sflag, size = 0x8, scoped, tag = 'scoped memory for tpu_custom_call.1']
    #allocation14 [shape = 'u8[1024]{0}', space=vmem, size = 0x400, scoped, tag = 'input window, operand 15']
    #allocation15 [shape = 'u8[16384]{0}', space=vmem, size = 0x4000, scoped, tag = 'output window, operand 0']
    %23 = vsyncpa [#allocation4], 0
    %s24 = scalar_lea.sflag [#allocation4], 1
    %25 = vsyncpa %s24, 0
    %26 = vsyncpa [#allocation7], 0
    %s27 = scalar_lea.sflag [#allocation7], 1
    %28 = vsyncpa %s27, 0
    %29 = vsyncpa [#allocation10], 0
    %s30 = scalar_lea.sflag [#allocation10], 1
    %31 = vsyncpa %s30, 0
    %32 = vsyncpa [#allocation13], 0
    %s33 = scalar_lea.sflag [#allocation13], 1
    %34 = vsyncpa %s33, 0
    %35 = vsyncpa [#allocation5], 0
    %s36 = scalar_lea.sflag [#allocation5], 1
    %37 = vsyncpa %s36, 0
    loop: start=0, step=1, limit=6
    $region2: #{tpu_custom_call.1} parent=1 // loop_pre_header
      _
    $region3: #{tpu_custom_call.1} parent=1 // loop_header
      %s39 = sphi 0, %s43
      %p40 = scmp.ge.s32.totalorder %s39, 6
      %s46 = sphi 0, %s58
      %s47 = sphi 0, %s54
      %s48 = sphi 0, %s46
      %s49 = sphi 0, %s47
      %s50 = sphi 0, %s48
      %s51 = sphi 0, %s49
      %s61 = sphi 0, %s63
      %s64 = sphi 0, %s61
      %s65 = sphi 0, %s64
      %s81 = sphi 0, %s65
      %s85 = sphi 0, %s85
      %s87 = sphi 0, %s85
      %s88 = sphi 0, %s87
      %s102 = sphi 0, %s88
      %s106 = sphi 0, %s106
      %s108 = sphi 0, %s106
      %s109 = sphi 0, %s108
      %s123 = sphi 0, %s109
      %s127 = sphi 0, %s127
      %s129 = sphi 0, %s127
      %s130 = sphi 0, %s129
      %s144 = sphi 0, %s130
      %s150 = sphi 0, %s152
      %s153 = sphi 0, %s150
      %s154 = sphi 0, %s153
      %s170 = sphi 0, %s154
      %s176 = sphi 0, %s178
      %s179 = sphi 0, %s176
      %s180 = sphi 0, %s179
      %s196 = sphi 0, %s180
      %s202 = sphi 0, %s204
      %s205 = sphi 0, %s202
      %s206 = sphi 0, %s205
      %s222 = sphi 0, %s206
      %s228 = sphi 0, %s230
      %s231 = sphi 0, %s228
      %s232 = sphi 0, %s231
      %s248 = sphi 0, %s232
      %s254 = sphi 0, %s256
      %s257 = sphi 0, %s254
      %s258 = sphi 0, %s257
      %s274 = sphi 0, %s258
      %s280 = sphi 0, %s282
      %s283 = sphi 0, %s280
      %s284 = sphi 0, %s283
      %s300 = sphi 0, %s284
      %s306 = sphi 0, %s308
      %s309 = sphi 0, %s306
      %s310 = sphi 0, %s309
      %s326 = sphi 0, %s310
      %s332 = sphi 0, %s334
      %s335 = sphi 0, %s332
      %s336 = sphi 0, %s335
      %s352 = sphi 0, %s336
      %s358 = sphi 0, %s360
      %s361 = sphi 0, %s358
      %s362 = sphi 0, %s361
      %s378 = sphi 0, %s362
      %s384 = sphi 0, %s386
      %s387 = sphi 0, %s384
      %s388 = sphi 0, %s387
      %s404 = sphi 0, %s388
      %s410 = sphi 0, %s412
      %s413 = sphi 0, %s410
      %s414 = sphi 0, %s413
      %s430 = sphi 0, %s414
      %s436 = sphi 0, %s438
      %s439 = sphi 0, %s436
      %s440 = sphi 0, %s439
      %s456 = sphi 0, %s440
      %s460 = sphi 0, %s460
      %s462 = sphi 0, %s460
      %s463 = sphi 0, %s462
      %s477 = sphi 0, %s463
      %s481 = sphi 0, %s481
      %s483 = sphi 0, %s481
      %s484 = sphi 0, %s483
      %s498 = sphi 0, %s484
      %s504 = sphi 0, %s506
      %s507 = sphi 0, %s504
      %s508 = sphi 0, %s507
      %s524 = sphi 0, %s508
    $region4: #{tpu_custom_call.1} parent=1 // loop_header_branch
      %42 = sbr.rel (%p40) target = $region8
    $region5: #{tpu_custom_call.1} parent=1 // loop_body
      %s44 = ssub.s32 %s39, 1
      %s45 = ssub.s32 %s39, 2
      %s52 = sadd.s32 1, %s47
      %p53 = scmp.ge.s32.totalorder %s52, 2
      %s54 = scalar_select %p53, 0, %s52
      %s55 = sadd.s32 1, %s46
      %s56 = scalar_select %p53, %s55, %s46
      %p57 = scmp.ge.s32.totalorder %s56, 2
      %s58 = scalar_select %p57, 0, %s56
      %s59 = ssub.s32 %s46, %s58
      %p60 = scmp.eq.s32.totalorder %s59, 0
      %s62 = sadd.s32 %s61, 1
      %s63 = scalar_select %p60, %s61, %s62
      %p66 = pneg %p60
      %p67 = scmp.eq.s32.totalorder %s39, 3
      %p68 = por %p66, %p67
      %p69 = scmp.ne.s32.totalorder %s61, %s64
      %p70 = scmp.eq.s32.totalorder %s39, 0
      %p71 = por %p69, %p70
      %p72 = scmp.ne.s32.totalorder %s61, %s64
      %p73 = scmp.eq.s32.totalorder %s44, 3
      %p74 = por %p72, %p73
      %p75 = scmp.ne.s32.totalorder %s64, %s65
      %p76 = scmp.eq.s32.totalorder %s44, 0
      %p77 = por %p75, %p76
      %p78 = scmp.ne.s32.totalorder %s64, %s65
      %p79 = scmp.eq.s32.totalorder %s45, 3
      %p80 = por %p78, %p79
      %p82 = scmp.ne.s32.totalorder %s65, %s81
      %p83 = scmp.eq.s32.totalorder %s45, 0
      %p84 = por %p82, %p83
      %s86 = sadd.s32 %s85, 1
      %p89 = scmp.eq.s32.totalorder %s39, 3
      %p90 = scmp.ne.s32.totalorder %s85, %s87
      %p91 = scmp.eq.s32.totalorder %s39, 0
      %p92 = por %p90, %p91
      %p93 = scmp.ne.s32.totalorder %s85, %s87
      %p94 = scmp.eq.s32.totalorder %s44, 3
      %p95 = por %p93, %p94
      %p96 = scmp.ne.s32.totalorder %s87, %s88
      %p97 = scmp.eq.s32.totalorder %s44, 0
      %p98 = por %p96, %p97
      %p99 = scmp.ne.s32.totalorder %s87, %s88
      %p100 = scmp.eq.s32.totalorder %s45, 3
      %p101 = por %p99, %p100
      %p103 = scmp.ne.s32.totalorder %s88, %s102
      %p104 = scmp.eq.s32.totalorder %s45, 0
      %p105 = por %p103, %p104
      %s107 = sadd.s32 %s106, 1
      %p110 = scmp.eq.s32.totalorder %s39, 3
      %p111 = scmp.ne.s32.totalorder %s106, %s108
      %p112 = scmp.eq.s32.totalorder %s39, 0
      %p113 = por %p111, %p112
      %p114 = scmp.ne.s32.totalorder %s106, %s108
      %p115 = scmp.eq.s32.totalorder %s44, 3
      %p116 = por %p114, %p115
      %p117 = scmp.ne.s32.totalorder %s108, %s109
      %p118 = scmp.eq.s32.totalorder %s44, 0
      %p119 = por %p117, %p118
      %p120 = scmp.ne.s32.totalorder %s108, %s109
      %p121 = scmp.eq.s32.totalorder %s45, 3
      %p122 = por %p120, %p121
      %p124 = scmp.ne.s32.totalorder %s109, %s123
      %p125 = scmp.eq.s32.totalorder %s45, 0
      %p126 = por %p124, %p125
      %s128 = sadd.s32 %s127, 1
      %p131 = scmp.eq.s32.totalorder %s39, 3
      %p132 = scmp.ne.s32.totalorder %s127, %s129
      %p133 = scmp.eq.s32.totalorder %s39, 0
      %p134 = por %p132, %p133
      %p135 = scmp.ne.s32.totalorder %s127, %s129
      %p136 = scmp.eq.s32.totalorder %s44, 3
      %p137 = por %p135, %p136
      %p138 = scmp.ne.s32.totalorder %s129, %s130
      %p139 = scmp.eq.s32.totalorder %s44, 0
      %p140 = por %p138, %p139
      %p141 = scmp.ne.s32.totalorder %s129, %s130
      %p142 = scmp.eq.s32.totalorder %s45, 3
      %p143 = por %p141, %p142
      %p145 = scmp.ne.s32.totalorder %s130, %s144
      %p146 = scmp.eq.s32.totalorder %s45, 0
      %p147 = por %p145, %p146
      %s148 = ssub.s32 %s47, %s54
      %p149 = scmp.eq.s32.totalorder %s148, 0
      %s151 = sadd.s32 %s150, 1
      %s152 = scalar_select %p149, %s150, %s151
      %p155 = pneg %p149
      %p156 = scmp.eq.s32.totalorder %s39, 3
      %p157 = por %p155, %p156
      %p158 = scmp.ne.s32.totalorder %s150, %s153
      %p159 = scmp.eq.s32.totalorder %s39, 0
      %p160 = por %p158, %p159
      %p161 = scmp.ne.s32.totalorder %s150, %s153
      %p162 = scmp.eq.s32.totalorder %s44, 3
      %p163 = por %p161, %p162
      %p164 = scmp.ne.s32.totalorder %s153, %s154
      %p165 = scmp.eq.s32.totalorder %s44, 0
      %p166 = por %p164, %p165
      %p167 = scmp.ne.s32.totalorder %s153, %s154
      %p168 = scmp.eq.s32.totalorder %s45, 3
      %p169 = por %p167, %p168
      %p171 = scmp.ne.s32.totalorder %s154, %s170
      %p172 = scmp.eq.s32.totalorder %s45, 0
      %p173 = por %p171, %p172
      %s174 = ssub.s32 %s47, %s54
      %p175 = scmp.eq.s32.totalorder %s174, 0
      %s177 = sadd.s32 %s176, 1
      %s178 = scalar_select %p175, %s176, %s177
      %p181 = pneg %p175
      %p182 = scmp.eq.s32.totalorder %s39, 3
      %p183 = por %p181, %p182
      %p184 = scmp.ne.s32.totalorder %s176, %s179
      %p185 = scmp.eq.s32.totalorder %s39, 0
      %p186 = por %p184, %p185
      %p187 = scmp.ne.s32.totalorder %s176, %s179
      %p188 = scmp.eq.s32.totalorder %s44, 3
      %p189 = por %p187, %p188
      %p190 = scmp.ne.s32.totalorder %s179, %s180
      %p191 = scmp.eq.s32.totalorder %s44, 0
      %p192 = por %p190, %p191
      %p193 = scmp.ne.s32.totalorder %s179, %s180
      %p194 = scmp.eq.s32.totalorder %s45, 3
      %p195 = por %p193, %p194
      %p197 = scmp.ne.s32.totalorder %s180, %s196
      %p198 = scmp.eq.s32.totalorder %s45, 0
      %p199 = por %p197, %p198
      %s200 = ssub.s32 %s47, %s54
      %p201 = scmp.eq.s32.totalorder %s200, 0
      %s203 = sadd.s32 %s202, 1
      %s204 = scalar_select %p201, %s202, %s203
      %p207 = pneg %p201
      %p208 = scmp.eq.s32.totalorder %s39, 3
      %p209 = por %p207, %p208
      %p210 = scmp.ne.s32.totalorder %s202, %s205
      %p211 = scmp.eq.s32.totalorder %s39, 0
      %p212 = por %p210, %p211
      %p213 = scmp.ne.s32.totalorder %s202, %s205
      %p214 = scmp.eq.s32.totalorder %s44, 3
      %p215 = por %p213, %p214
      %p216 = scmp.ne.s32.totalorder %s205, %s206
      %p217 = scmp.eq.s32.totalorder %s44, 0
      %p218 = por %p216, %p217
      %p219 = scmp.ne.s32.totalorder %s205, %s206
      %p220 = scmp.eq.s32.totalorder %s45, 3
      %p221 = por %p219, %p220
      %p223 = scmp.ne.s32.totalorder %s206, %s222
      %p224 = scmp.eq.s32.totalorder %s45, 0
      %p225 = por %p223, %p224
      %s226 = ssub.s32 %s47, %s54
      %p227 = scmp.eq.s32.totalorder %s226, 0
      %s229 = sadd.s32 %s228, 1
      %s230 = scalar_select %p227, %s228, %s229
      %p233 = pneg %p227
      %p234 = scmp.eq.s32.totalorder %s39, 3
      %p235 = por %p233, %p234
      %p236 = scmp.ne.s32.totalorder %s228, %s231
      %p237 = scmp.eq.s32.totalorder %s39, 0
      %p238 = por %p236, %p237
      %p239 = scmp.ne.s32.totalorder %s228, %s231
      %p240 = scmp.eq.s32.totalorder %s44, 3
      %p241 = por %p239, %p240
      %p242 = scmp.ne.s32.totalorder %s231, %s232
      %p243 = scmp.eq.s32.totalorder %s44, 0
      %p244 = por %p242, %p243
      %p245 = scmp.ne.s32.totalorder %s231, %s232
      %p246 = scmp.eq.s32.totalorder %s45, 3
      %p247 = por %p245, %p246
      %p249 = scmp.ne.s32.totalorder %s232, %s248
      %p250 = scmp.eq.s32.totalorder %s45, 0
      %p251 = por %p249, %p250
      %s252 = ssub.s32 %s47, %s54
      %p253 = scmp.eq.s32.totalorder %s252, 0
      %s255 = sadd.s32 %s254, 1
      %s256 = scalar_select %p253, %s254, %s255
      %p259 = pneg %p253
      %p260 = scmp.eq.s32.totalorder %s39, 3
      %p261 = por %p259, %p260
      %p262 = scmp.ne.s32.totalorder %s254, %s257
      %p263 = scmp.eq.s32.totalorder %s39, 0
      %p264 = por %p262, %p263
      %p265 = scmp.ne.s32.totalorder %s254, %s257
      %p266 = scmp.eq.s32.totalorder %s44, 3
      %p267 = por %p265, %p266
      %p268 = scmp.ne.s32.totalorder %s257, %s258
      %p269 = scmp.eq.s32.totalorder %s44, 0
      %p270 = por %p268, %p269
      %p271 = scmp.ne.s32.totalorder %s257, %s258
      %p272 = scmp.eq.s32.totalorder %s45, 3
      %p273 = por %p271, %p272
      %p275 = scmp.ne.s32.totalorder %s258, %s274
      %p276 = scmp.eq.s32.totalorder %s45, 0
      %p277 = por %p275, %p276
      %s278 = ssub.s32 %s47, %s54
      %p279 = scmp.eq.s32.totalorder %s278, 0
      %s281 = sadd.s32 %s280, 1
      %s282 = scalar_select %p279, %s280, %s281
      %p285 = pneg %p279
      %p286 = scmp.eq.s32.totalorder %s39, 3
      %p287 = por %p285, %p286
      %p288 = scmp.ne.s32.totalorder %s280, %s283
      %p289 = scmp.eq.s32.totalorder %s39, 0
      %p290 = por %p288, %p289
      %p291 = scmp.ne.s32.totalorder %s280, %s283
      %p292 = scmp.eq.s32.totalorder %s44, 3
      %p293 = por %p291, %p292
      %p294 = scmp.ne.s32.totalorder %s283, %s284
      %p295 = scmp.eq.s32.totalorder %s44, 0
      %p296 = por %p294, %p295
      %p297 = scmp.ne.s32.totalorder %s283, %s284
      %p298 = scmp.eq.s32.totalorder %s45, 3
      %p299 = por %p297, %p298
      %p301 = scmp.ne.s32.totalorder %s284, %s300
      %p302 = scmp.eq.s32.totalorder %s45, 0
      %p303 = por %p301, %p302
      %s304 = ssub.s32 %s47, %s54
      %p305 = scmp.eq.s32.totalorder %s304, 0
      %s307 = sadd.s32 %s306, 1
      %s308 = scalar_select %p305, %s306, %s307
      %p311 = pneg %p305
      %p312 = scmp.eq.s32.totalorder %s39, 3
      %p313 = por %p311, %p312
      %p314 = scmp.ne.s32.totalorder %s306, %s309
      %p315 = scmp.eq.s32.totalorder %s39, 0
      %p316 = por %p314, %p315
      %p317 = scmp.ne.s32.totalorder %s306, %s309
      %p318 = scmp.eq.s32.totalorder %s44, 3
      %p319 = por %p317, %p318
      %p320 = scmp.ne.s32.totalorder %s309, %s310
      %p321 = scmp.eq.s32.totalorder %s44, 0
      %p322 = por %p320, %p321
      %p323 = scmp.ne.s32.totalorder %s309, %s310
      %p324 = scmp.eq.s32.totalorder %s45, 3
      %p325 = por %p323, %p324
      %p327 = scmp.ne.s32.totalorder %s310, %s326
      %p328 = scmp.eq.s32.totalorder %s45, 0
      %p329 = por %p327, %p328
      %s330 = ssub.s32 %s47, %s54
      %p331 = scmp.eq.s32.totalorder %s330, 0
      %s333 = sadd.s32 %s332, 1
      %s334 = scalar_select %p331, %s332, %s333
      %p337 = pneg %p331
      %p338 = scmp.eq.s32.totalorder %s39, 3
      %p339 = por %p337, %p338
      %p340 = scmp.ne.s32.totalorder %s332, %s335
      %p341 = scmp.eq.s32.totalorder %s39, 0
      %p342 = por %p340, %p341
      %p343 = scmp.ne.s32.totalorder %s332, %s335
      %p344 = scmp.eq.s32.totalorder %s44, 3
      %p345 = por %p343, %p344
      %p346 = scmp.ne.s32.totalorder %s335, %s336
      %p347 = scmp.eq.s32.totalorder %s44, 0
      %p348 = por %p346, %p347
      %p349 = scmp.ne.s32.totalorder %s335, %s336
      %p350 = scmp.eq.s32.totalorder %s45, 3
      %p351 = por %p349, %p350
      %p353 = scmp.ne.s32.totalorder %s336, %s352
      %p354 = scmp.eq.s32.totalorder %s45, 0
      %p355 = por %p353, %p354
      %s356 = ssub.s32 %s47, %s54
      %p357 = scmp.eq.s32.totalorder %s356, 0
      %s359 = sadd.s32 %s358, 1
      %s360 = scalar_select %p357, %s358, %s359
      %p363 = pneg %p357
      %p364 = scmp.eq.s32.totalorder %s39, 3
      %p365 = por %p363, %p364
      %p366 = scmp.ne.s32.totalorder %s358, %s361
      %p367 = scmp.eq.s32.totalorder %s39, 0
      %p368 = por %p366, %p367
      %p369 = scmp.ne.s32.totalorder %s358, %s361
      %p370 = scmp.eq.s32.totalorder %s44, 3
      %p371 = por %p369, %p370
      %p372 = scmp.ne.s32.totalorder %s361, %s362
      %p373 = scmp.eq.s32.totalorder %s44, 0
      %p374 = por %p372, %p373
      %p375 = scmp.ne.s32.totalorder %s361, %s362
      %p376 = scmp.eq.s32.totalorder %s45, 3
      %p377 = por %p375, %p376
      %p379 = scmp.ne.s32.totalorder %s362, %s378
      %p380 = scmp.eq.s32.totalorder %s45, 0
      %p381 = por %p379, %p380
      %s382 = ssub.s32 %s47, %s54
      %p383 = scmp.eq.s32.totalorder %s382, 0
      %s385 = sadd.s32 %s384, 1
      %s386 = scalar_select %p383, %s384, %s385
      %p389 = pneg %p383
      %p390 = scmp.eq.s32.totalorder %s39, 3
      %p391 = por %p389, %p390
      %p392 = scmp.ne.s32.totalorder %s384, %s387
      %p393 = scmp.eq.s32.totalorder %s39, 0
      %p394 = por %p392, %p393
      %p395 = scmp.ne.s32.totalorder %s384, %s387
      %p396 = scmp.eq.s32.totalorder %s44, 3
      %p397 = por %p395, %p396
      %p398 = scmp.ne.s32.totalorder %s387, %s388
      %p399 = scmp.eq.s32.totalorder %s44, 0
      %p400 = por %p398, %p399
      %p401 = scmp.ne.s32.totalorder %s387, %s388
      %p402 = scmp.eq.s32.totalorder %s45, 3
      %p403 = por %p401, %p402
      %p405 = scmp.ne.s32.totalorder %s388, %s404
      %p406 = scmp.eq.s32.totalorder %s45, 0
      %p407 = por %p405, %p406
      %s408 = ssub.s32 %s47, %s54
      %p409 = scmp.eq.s32.totalorder %s408, 0
      %s411 = sadd.s32 %s410, 1
      %s412 = scalar_select %p409, %s410, %s411
      %p415 = pneg %p409
      %p416 = scmp.eq.s32.totalorder %s39, 3
      %p417 = por %p415, %p416
      %p418 = scmp.ne.s32.totalorder %s410, %s413
      %p419 = scmp.eq.s32.totalorder %s39, 0
      %p420 = por %p418, %p419
      %p421 = scmp.ne.s32.totalorder %s410, %s413
      %p422 = scmp.eq.s32.totalorder %s44, 3
      %p423 = por %p421, %p422
      %p424 = scmp.ne.s32.totalorder %s413, %s414
      %p425 = scmp.eq.s32.totalorder %s44, 0
      %p426 = por %p424, %p425
      %p427 = scmp.ne.s32.totalorder %s413, %s414
      %p428 = scmp.eq.s32.totalorder %s45, 3
      %p429 = por %p427, %p428
      %p431 = scmp.ne.s32.totalorder %s414, %s430
      %p432 = scmp.eq.s32.totalorder %s45, 0
      %p433 = por %p431, %p432
      %s434 = ssub.s32 %s47, %s54
      %p435 = scmp.eq.s32.totalorder %s434, 0
      %s437 = sadd.s32 %s436, 1
      %s438 = scalar_select %p435, %s436, %s437
      %p441 = pneg %p435
      %p442 = scmp.eq.s32.totalorder %s39, 3
      %p443 = por %p441, %p442
      %p444 = scmp.ne.s32.totalorder %s436, %s439
      %p445 = scmp.eq.s32.totalorder %s39, 0
      %p446 = por %p444, %p445
      %p447 = scmp.ne.s32.totalorder %s436, %s439
      %p448 = scmp.eq.s32.totalorder %s44, 3
      %p449 = por %p447, %p448
      %p450 = scmp.ne.s32.totalorder %s439, %s440
      %p451 = scmp.eq.s32.totalorder %s44, 0
      %p452 = por %p450, %p451
      %p453 = scmp.ne.s32.totalorder %s439, %s440
      %p454 = scmp.eq.s32.totalorder %s45, 3
      %p455 = por %p453, %p454
      %p457 = scmp.ne.s32.totalorder %s440, %s456
      %p458 = scmp.eq.s32.totalorder %s45, 0
      %p459 = por %p457, %p458
      %s461 = sadd.s32 %s460, 1
      %p464 = scmp.eq.s32.totalorder %s39, 3
      %p465 = scmp.ne.s32.totalorder %s460, %s462
      %p466 = scmp.eq.s32.totalorder %s39, 0
      %p467 = por %p465, %p466
      %p468 = scmp.ne.s32.totalorder %s460, %s462
      %p469 = scmp.eq.s32.totalorder %s44, 3
      %p470 = por %p468, %p469
      %p471 = scmp.ne.s32.totalorder %s462, %s463
      %p472 = scmp.eq.s32.totalorder %s44, 0
      %p473 = por %p471, %p472
      %p474 = scmp.ne.s32.totalorder %s462, %s463
      %p475 = scmp.eq.s32.totalorder %s45, 3
      %p476 = por %p474, %p475
      %p478 = scmp.ne.s32.totalorder %s463, %s477
      %p479 = scmp.eq.s32.totalorder %s45, 0
      %p480 = por %p478, %p479
      %s482 = sadd.s32 %s481, 1
      %p485 = scmp.eq.s32.totalorder %s39, 3
      %p486 = scmp.ne.s32.totalorder %s481, %s483
      %p487 = scmp.eq.s32.totalorder %s39, 0
      %p488 = por %p486, %p487
      %p489 = scmp.ne.s32.totalorder %s481, %s483
      %p490 = scmp.eq.s32.totalorder %s44, 3
      %p491 = por %p489, %p490
      %p492 = scmp.ne.s32.totalorder %s483, %s484
      %p493 = scmp.eq.s32.totalorder %s44, 0
      %p494 = por %p492, %p493
      %p495 = scmp.ne.s32.totalorder %s483, %s484
      %p496 = scmp.eq.s32.totalorder %s45, 3
      %p497 = por %p495, %p496
      %p499 = scmp.ne.s32.totalorder %s484, %s498
      %p500 = scmp.eq.s32.totalorder %s45, 0
      %p501 = por %p499, %p500
      %s502 = ssub.s32 %s46, %s58
      %p503 = scmp.eq.s32.totalorder %s502, 0
      %s505 = sadd.s32 %s504, 1
      %s506 = scalar_select %p503, %s504, %s505
      %p509 = pneg %p503
      %p510 = scmp.eq.s32.totalorder %s39, 3
      %p511 = por %p509, %p510
      %p512 = scmp.ne.s32.totalorder %s504, %s507
      %p513 = scmp.eq.s32.totalorder %s39, 0
      %p514 = por %p512, %p513
      %p515 = scmp.ne.s32.totalorder %s504, %s507
      %p516 = scmp.eq.s32.totalorder %s44, 3
      %p517 = por %p515, %p516
      %p518 = scmp.ne.s32.totalorder %s507, %s508
      %p519 = scmp.eq.s32.totalorder %s44, 0
      %p520 = por %p518, %p519
      %p521 = scmp.ne.s32.totalorder %s507, %s508
      %p522 = scmp.eq.s32.totalorder %s45, 3
      %p523 = por %p521, %p522
      %p525 = scmp.ne.s32.totalorder %s508, %s524
      %p526 = scmp.eq.s32.totalorder %s45, 0
      %p527 = por %p525, %p526
      %p528 = scmp.le.s32.totalorder 1, %s39
      %p529 = scmp.lt.s32.totalorder %s39, 5
      %p530 = pnand %p528, %p529
      %p531 = pneg %p530
      // Predicated region
      $region9: #{tpu_custom_call.1} parent=5 // pred_check
        _
      $region10: #{tpu_custom_call.1} parent=5 // pred_check_branch
        %533 = sbr.rel (%p530) target = $region12
      $region11: #{tpu_custom_call.1} parent=5 // pred_region
        %s534 = ssub.s32 %s39, 1
        // Predicated region
        $region13: #{tpu_custom_call.1} parent=11 // pred_check
          %p535 = pneg %p98
        $region14: #{tpu_custom_call.1} parent=11 // pred_check_branch
          %537 = sbr.rel (%p535) target = $region16
        $region15: #{tpu_custom_call.1} parent=11 // pred_region
          _
        $region16: #{tpu_custom_call.1} parent=11 // pred_fallthru
          _
        // Predicated region
        $region17: #{tpu_custom_call.1} parent=11 // pred_check
          %p538 = pneg %p119
        $region18: #{tpu_custom_call.1} parent=11 // pred_check_branch
          %540 = sbr.rel (%p538) target = $region20
        $region19: #{tpu_custom_call.1} parent=11 // pred_region
          _
        $region20: #{tpu_custom_call.1} parent=11 // pred_fallthru
          _
        // Predicated region
        $region21: #{tpu_custom_call.1} parent=11 // pred_check
          %p541 = pneg %p140
        $region22: #{tpu_custom_call.1} parent=11 // pred_check_branch
          %543 = sbr.rel (%p541) target = $region24
        $region23: #{tpu_custom_call.1} parent=11 // pred_region
          _
        $region24: #{tpu_custom_call.1} parent=11 // pred_fallthru
          _
        // Predicated region
        $region25: #{tpu_custom_call.1} parent=11 // pred_check
          %p544 = pneg %p473
        $region26: #{tpu_custom_call.1} parent=11 // pred_check_branch
          %546 = sbr.rel (%p544) target = $region28
        $region27: #{tpu_custom_call.1} parent=11 // pred_region
          _
        $region28: #{tpu_custom_call.1} parent=11 // pred_fallthru
          _
        // Predicated region
        $region29: #{tpu_custom_call.1} parent=11 // pred_check
          %p547 = pneg %p494
        $region30: #{tpu_custom_call.1} parent=11 // pred_check_branch
          %549 = sbr.rel (%p547) target = $region32
        $region31: #{tpu_custom_call.1} parent=11 // pred_region
          _
        $region32: #{tpu_custom_call.1} parent=11 // pred_fallthru
          _
      $region12: #{tpu_custom_call.1} parent=5 // pred_fallthru
        _
      %p550 = scmp.lt.s32.totalorder %s39, 4
      // Predicated region
      $region33: #{tpu_custom_call.1} parent=5 // pred_check
        %p551 = pneg %p550
      $region34: #{tpu_custom_call.1} parent=5 // pred_check_branch
        %553 = sbr.rel (%p551) target = $region36
      $region35: #{tpu_custom_call.1} parent=5 // pred_region
        // Predicated region
        $region37: #{tpu_custom_call.1} parent=35 // pred_check
          %p554 = pneg %p71
        $region38: #{tpu_custom_call.1} parent=35 // pred_check_branch
          %556 = sbr.rel (%p554) target = $region40
        $region39: #{tpu_custom_call.1} parent=35 // pred_region
          %s557 = sand.u32 %s61, 1
          %s558 = scalar_lea.sflag [#allocation4], %s557
          %s559 = sand.u32 %s61, 1
          %s560 = smul.addr %s559, 16
          %s561 = scalar_lea.vmem [#allocation3], %s560
          %563 = vsyncadd %s558, 0
          %s564 = smul.addr %s46, 2
          %s565 = smul.addr %s564, 8
          %s566 = scalar_lea.hbm %s0, %s565
          %s567 = sshll.u32 %s566, 4
          %s568 = int_to_ptr.hbm [resolvable:$true] %s567
          %s569 = sshll.u32 %s561, 4
          %s570 = int_to_ptr.vmem [resolvable:$true] %s569
          %575 = dma.hbm_to_vmem [thread:$0]  %s568, 256, %s570, %s558, 128, 128, 8
        $region40: #{tpu_custom_call.1} parent=35 // pred_fallthru
          _
        // Predicated region
        $region41: #{tpu_custom_call.1} parent=35 // pred_check
          %p576 = pneg %p160
        $region42: #{tpu_custom_call.1} parent=35 // pred_check_branch
          %578 = sbr.rel (%p576) target = $region44
        $region43: #{tpu_custom_call.1} parent=35 // pred_region
          %p579 = scmp.lt.s32.totalorder %s47, 1
          %s580 = scalar_select %p579, %s47, 1
          %s581 = scalar_lea.vmem %s4, %s580
        $region44: #{tpu_custom_call.1} parent=35 // pred_fallthru
          _
        // Predicated region
        $region45: #{tpu_custom_call.1} parent=35 // pred_check
          %p582 = pneg %p186
        $region46: #{tpu_custom_call.1} parent=35 // pred_check_branch
          %584 = sbr.rel (%p582) target = $region48
        $region47: #{tpu_custom_call.1} parent=35 // pred_region
          %p585 = scmp.lt.s32.totalorder %s47, 1
          %s586 = scalar_select %p585, %s47, 1
          %s587 = scalar_lea.vmem %s5, %s586
        $region48: #{tpu_custom_call.1} parent=35 // pred_fallthru
          _
        // Predicated region
        $region49: #{tpu_custom_call.1} parent=35 // pred_check
          %p588 = pneg %p212
        $region50: #{tpu_custom_call.1} parent=35 // pred_check_branch
          %590 = sbr.rel (%p588) target = $region52
        $region51: #{tpu_custom_call.1} parent=35 // pred_region
          %p591 = scmp.lt.s32.totalorder %s47, 1
          %s592 = scalar_select %p591, %s47, 1
          %s593 = smul.addr %s592, 12
          %s594 = smul.addr %s593, 4
          %s595 = scalar_lea.vmem %s6, %s594
        $region52: #{tpu_custom_call.1} parent=35 // pred_fallthru
          _
        // Predicated region
        $region53: #{tpu_custom_call.1} parent=35 // pred_check
          %p596 = pneg %p238
        $region54: #{tpu_custom_call.1} parent=35 // pred_check_branch
          %598 = sbr.rel (%p596) target = $region56
        $region55: #{tpu_custom_call.1} parent=35 // pred_region
          %p599 = scmp.lt.s32.totalorder %s47, 1
          %s600 = scalar_select %p599, %s47, 1
          %s601 = smul.addr %s600, 3
          %s602 = scalar_lea.vmem %s7, %s601
        $region56: #{tpu_custom_call.1} parent=35 // pred_fallthru
          _
        // Predicated region
        $region57: #{tpu_custom_call.1} parent=35 // pred_check
          %p603 = pneg %p264
        $region58: #{tpu_custom_call.1} parent=35 // pred_check_branch
          %605 = sbr.rel (%p603) target = $region60
        $region59: #{tpu_custom_call.1} parent=35 // pred_region
          %s606 = sand.u32 %s39, 1
          %s607 = scalar_lea.sflag [#allocation7], %s606
          %s608 = sand.u32 %s254, 1
          %s609 = smul.addr %s608, 16
          %s610 = scalar_lea.vmem [#allocation6], %s609
          %612 = vsyncadd %s607, 0
          %s613 = smul.addr %s47, 4
          %s614 = smul.addr %s613, 4
          %s615 = scalar_lea.hbm %s8, %s614
          %s616 = sshll.u32 %s615, 4
          %s617 = int_to_ptr.hbm [resolvable:$true] %s616
          %s618 = sshll.u32 %s610, 4
          %s619 = int_to_ptr.vmem [resolvable:$true] %s618
          %624 = dma.hbm_to_vmem [thread:$0]  %s617, 256, %s619, %s607, 64, 64, 4
        $region60: #{tpu_custom_call.1} parent=35 // pred_fallthru
          _
        // Predicated region
        $region61: #{tpu_custom_call.1} parent=35 // pred_check
          %p625 = pneg %p290
        $region62: #{tpu_custom_call.1} parent=35 // pred_check_branch
          %627 = sbr.rel (%p625) target = $region64
        $region63: #{tpu_custom_call.1} parent=35 // pred_region
          %p628 = scmp.lt.s32.totalorder %s47, 1
          %s629 = scalar_select %p628, %s47, 1
          %s630 = scalar_lea.vmem %s9, %s629
        $region64: #{tpu_custom_call.1} parent=35 // pred_fallthru
          _
        // Predicated region
        $region65: #{tpu_custom_call.1} parent=35 // pred_check
          %p631 = pneg %p316
        $region66: #{tpu_custom_call.1} parent=35 // pred_check_branch
          %633 = sbr.rel (%p631) target = $region68
        $region67: #{tpu_custom_call.1} parent=35 // pred_region
          %s634 = sand.u32 %s39, 1
          %s635 = scalar_lea.sflag [#allocation7], %s634
          %s636 = sand.u32 %s306, 1
          %s637 = scalar_lea.vmem [#allocation8], %s636
          %639 = vsyncadd %s635, 0
          %s640 = scalar_lea.hbm %s10, %s47
          %s642 = sshll.u32 %s640, 4
          %s643 = int_to_ptr.hbm [resolvable:$true] %s642
          %s644 = sshll.u32 %s637, 4
          %s645 = int_to_ptr.vmem [resolvable:$true] %s644
          %647 = dma.hbm_to_vmem [thread:$0]  %s643, 16, %s645, %s635
        $region68: #{tpu_custom_call.1} parent=35 // pred_fallthru
          _
        // Predicated region
        $region69: #{tpu_custom_call.1} parent=35 // pred_check
          %p648 = pneg %p342
        $region70: #{tpu_custom_call.1} parent=35 // pred_check_branch
          %650 = sbr.rel (%p648) target = $region72
        $region71: #{tpu_custom_call.1} parent=35 // pred_region
          %s651 = sand.u32 %s39, 1
          %s652 = scalar_lea.sflag [#allocation10], %s651
          %s653 = sand.u32 %s332, 1
          %s654 = scalar_lea.vmem [#allocation9], %s653
          %656 = vsyncadd %s652, 0
          %s657 = scalar_lea.hbm %s11, %s47
          %s659 = sshll.u32 %s657, 4
          %s660 = int_to_ptr.hbm [resolvable:$true] %s659
          %s661 = sshll.u32 %s654, 4
          %s662 = int_to_ptr.vmem [resolvable:$true] %s661
          %664 = dma.hbm_to_vmem [thread:$0]  %s660, 16, %s662, %s652
        $region72: #{tpu_custom_call.1} parent=35 // pred_fallthru
          _
        // Predicated region
        $region73: #{tpu_custom_call.1} parent=35 // pred_check
          %p665 = pneg %p368
        $region74: #{tpu_custom_call.1} parent=35 // pred_check_branch
          %667 = sbr.rel (%p665) target = $region76
        $region75: #{tpu_custom_call.1} parent=35 // pred_region
          %s668 = sand.u32 %s39, 1
          %s669 = scalar_lea.sflag [#allocation10], %s668
          %s670 = sand.u32 %s358, 1
          %s671 = smul.addr %s670, 16
          %s672 = scalar_lea.vmem [#allocation11], %s671
          %674 = vsyncadd %s669, 0
          %s675 = smul.addr %s47, 4
          %s676 = smul.addr %s675, 4
          %s677 = scalar_lea.hbm %s12, %s676
          %s678 = sshll.u32 %s677, 4
          %s679 = int_to_ptr.hbm [resolvable:$true] %s678
          %s680 = sshll.u32 %s672, 4
          %s681 = int_to_ptr.vmem [resolvable:$true] %s680
          %686 = dma.hbm_to_vmem [thread:$0]  %s679, 256, %s681, %s669, 64, 64, 4
        $region76: #{tpu_custom_call.1} parent=35 // pred_fallthru
          _
        // Predicated region
        $region77: #{tpu_custom_call.1} parent=35 // pred_check
          %p687 = pneg %p394
        $region78: #{tpu_custom_call.1} parent=35 // pred_check_branch
          %689 = sbr.rel (%p687) target = $region80
        $region79: #{tpu_custom_call.1} parent=35 // pred_region
          %s690 = sand.u32 %s39, 1
          %s691 = scalar_lea.sflag [#allocation13], %s690
          %s692 = sand.u32 %s384, 1
          %s693 = scalar_lea.vmem [#allocation12], %s692
          %695 = vsyncadd %s691, 0
          %s696 = scalar_lea.hbm %s13, %s47
          %s698 = sshll.u32 %s696, 4
          %s699 = int_to_ptr.hbm [resolvable:$true] %s698
          %s700 = sshll.u32 %s693, 4
          %s701 = int_to_ptr.vmem [resolvable:$true] %s700
          %703 = dma.hbm_to_vmem [thread:$0]  %s699, 16, %s701, %s691
        $region80: #{tpu_custom_call.1} parent=35 // pred_fallthru
          _
        // Predicated region
        $region81: #{tpu_custom_call.1} parent=35 // pred_check
          %p704 = pneg %p420
        $region82: #{tpu_custom_call.1} parent=35 // pred_check_branch
          %706 = sbr.rel (%p704) target = $region84
        $region83: #{tpu_custom_call.1} parent=35 // pred_region
          %p707 = scmp.lt.s32.totalorder %s47, 1
          %s708 = scalar_select %p707, %s47, 1
          %s709 = smul.addr %s708, 8
          %s710 = smul.addr %s709, 4
          %s711 = scalar_lea.vmem %s14, %s710
        $region84: #{tpu_custom_call.1} parent=35 // pred_fallthru
          _
        // Predicated region
        $region85: #{tpu_custom_call.1} parent=35 // pred_check
          %p712 = pneg %p446
        $region86: #{tpu_custom_call.1} parent=35 // pred_check_branch
          %714 = sbr.rel (%p712) target = $region88
        $region87: #{tpu_custom_call.1} parent=35 // pred_region
          %s715 = sand.u32 %s39, 1
          %s716 = scalar_lea.sflag [#allocation13], %s715
          %s717 = sand.u32 %s436, 1
          %s718 = scalar_lea.vmem [#allocation14], %s717
          %720 = vsyncadd %s716, 0
          %s721 = scalar_lea.hbm %s15, %s47
          %s723 = sshll.u32 %s721, 4
          %s724 = int_to_ptr.hbm [resolvable:$true] %s723
          %s725 = sshll.u32 %s718, 4
          %s726 = int_to_ptr.vmem [resolvable:$true] %s725
          %728 = dma.hbm_to_vmem [thread:$0]  %s724, 16, %s726, %s716
        $region88: #{tpu_custom_call.1} parent=35 // pred_fallthru
          _
      $region36: #{tpu_custom_call.1} parent=5 // pred_fallthru
        _
      %p729 = scmp.le.s32.totalorder 1, %s39
      %p730 = scmp.lt.s32.totalorder %s39, 5
      %p731 = pnand %p729, %p730
      %p732 = pneg %p731
      // Predicated region
      $region89: #{tpu_custom_call.1} parent=5 // pred_check
        _
      $region90: #{tpu_custom_call.1} parent=5 // pred_check_branch
        %734 = sbr.rel (%p731) target = $region92
      $region91: #{tpu_custom_call.1} parent=5 // pred_region
        %s735 = ssub.s32 %s39, 1
        %s736 = sand.u32 %s64, 1
        %s737 = scalar_lea.sflag [#allocation4], %s736
        %s738 = sand.u32 %s64, 1
        %s739 = smul.addr %s738, 16
        %s740 = scalar_lea.vmem [#allocation3], %s739
        // Predicated region
        $region93: #{tpu_custom_call.1} parent=91 // pred_check
          %p741 = pneg %p77
        $region94: #{tpu_custom_call.1} parent=91 // pred_check_branch
          %743 = sbr.rel (%p741) target = $region96
        $region95: #{tpu_custom_call.1} parent=91 // pred_region
          %745 = dma.done %s737, 256
        $region96: #{tpu_custom_call.1} parent=91 // pred_fallthru
          _
        %s746 = sand.u32 %s44, 1
        %s747 = scalar_lea.sflag [#allocation7], %s746
        %s748 = sand.u32 %s257, 1
        %s749 = smul.addr %s748, 16
        %s750 = scalar_lea.vmem [#allocation6], %s749
        // Predicated region
        $region97: #{tpu_custom_call.1} parent=91 // pred_check
          %p751 = pneg %p270
        $region98: #{tpu_custom_call.1} parent=91 // pred_check_branch
          %753 = sbr.rel (%p751) target = $region100
        $region99: #{tpu_custom_call.1} parent=91 // pred_region
          %755 = dma.done %s747, 256
        $region100: #{tpu_custom_call.1} parent=91 // pred_fallthru
          _
        %s756 = sand.u32 %s44, 1
        %s757 = scalar_lea.sflag [#allocation7], %s756
        %s758 = sand.u32 %s309, 1
        %s759 = scalar_lea.vmem [#allocation8], %s758
        // Predicated region
        $region101: #{tpu_custom_call.1} parent=91 // pred_check
          %p760 = pneg %p322
        $region102: #{tpu_custom_call.1} parent=91 // pred_check_branch
          %762 = sbr.rel (%p760) target = $region104
        $region103: #{tpu_custom_call.1} parent=91 // pred_region
          %764 = dma.done %s757, 16
        $region104: #{tpu_custom_call.1} parent=91 // pred_fallthru
          _
        %s765 = sand.u32 %s44, 1
        %s766 = scalar_lea.sflag [#allocation10], %s765
        %s767 = sand.u32 %s335, 1
        %s768 = scalar_lea.vmem [#allocation9], %s767
        // Predicated region
        $region105: #{tpu_custom_call.1} parent=91 // pred_check
          %p769 = pneg %p348
        $region106: #{tpu_custom_call.1} parent=91 // pred_check_branch
          %771 = sbr.rel (%p769) target = $region108
        $region107: #{tpu_custom_call.1} parent=91 // pred_region
          %773 = dma.done %s766, 16
        $region108: #{tpu_custom_call.1} parent=91 // pred_fallthru
          _
        %s774 = sand.u32 %s44, 1
        %s775 = scalar_lea.sflag [#allocation10], %s774
        %s776 = sand.u32 %s361, 1
        %s777 = smul.addr %s776, 16
        %s778 = scalar_lea.vmem [#allocation11], %s777
        // Predicated region
        $region109: #{tpu_custom_call.1} parent=91 // pred_check
          %p779 = pneg %p374
        $region110: #{tpu_custom_call.1} parent=91 // pred_check_branch
          %781 = sbr.rel (%p779) target = $region112
        $region111: #{tpu_custom_call.1} parent=91 // pred_region
          %783 = dma.done %s775, 256
        $region112: #{tpu_custom_call.1} parent=91 // pred_fallthru
          _
        %s784 = sand.u32 %s44, 1
        %s785 = scalar_lea.sflag [#allocation13], %s784
        %s786 = sand.u32 %s387, 1
        %s787 = scalar_lea.vmem [#allocation12], %s786
        // Predicated region
        $region113: #{tpu_custom_call.1} parent=91 // pred_check
          %p788 = pneg %p400
        $region114: #{tpu_custom_call.1} parent=91 // pred_check_branch
          %790 = sbr.rel (%p788) target = $region116
        $region115: #{tpu_custom_call.1} parent=91 // pred_region
          %792 = dma.done %s785, 16
        $region116: #{tpu_custom_call.1} parent=91 // pred_fallthru
          _
        %s793 = sand.u32 %s44, 1
        %s794 = scalar_lea.sflag [#allocation13], %s793
        %s795 = sand.u32 %s439, 1
        %s796 = scalar_lea.vmem [#allocation14], %s795
        // Predicated region
        $region117: #{tpu_custom_call.1} parent=91 // pred_check
          %p797 = pneg %p452
        $region118: #{tpu_custom_call.1} parent=91 // pred_check_branch
          %799 = sbr.rel (%p797) target = $region120
        $region119: #{tpu_custom_call.1} parent=91 // pred_region
          %801 = dma.done %s794, 16
        $region120: #{tpu_custom_call.1} parent=91 // pred_fallthru
          _
        %s802 = sand.u32 %s64, 1
        %s803 = scalar_lea.sflag [#allocation4], %s802
        %s804 = sand.u32 %s64, 1
        %s805 = smul.addr %s804, 16
        %s806 = scalar_lea.vmem [#allocation3], %s805
        %p807 = pneg %p77
        %p808 = pneg %p74
        %p809 = pneg %p98
        %p810 = pneg %p95
        %p811 = pneg %p119
        %p812 = pneg %p116
        %p813 = pneg %p140
        %p814 = pneg %p137
        %p815 = scmp.lt.s32.totalorder %s49, 1
        %s816 = scalar_select %p815, %s49, 1
        %s817 = scalar_lea.vmem %s4, %s816
        %p818 = pneg %p166
        %p819 = pneg %p163
        %p820 = scmp.lt.s32.totalorder %s49, 1
        %s821 = scalar_select %p820, %s49, 1
        %s822 = scalar_lea.vmem %s5, %s821
        %p823 = pneg %p192
        %p824 = pneg %p189
        %p825 = scmp.lt.s32.totalorder %s49, 1
        %s826 = scalar_select %p825, %s49, 1
        %s827 = smul.addr %s826, 12
        %s828 = smul.addr %s827, 4
        %s829 = scalar_lea.vmem %s6, %s828
        %p830 = pneg %p218
        %p831 = pneg %p215
        %p832 = scmp.lt.s32.totalorder %s49, 1
        %s833 = scalar_select %p832, %s49, 1
        %s834 = smul.addr %s833, 3
        %s835 = scalar_lea.vmem %s7, %s834
        %p836 = pneg %p244
        %p837 = pneg %p241
        %s838 = sand.u32 %s44, 1
        %s839 = scalar_lea.sflag [#allocation7], %s838
        %s840 = sand.u32 %s257, 1
        %s841 = smul.addr %s840, 16
        %s842 = scalar_lea.vmem [#allocation6], %s841
        %p843 = pneg %p270
        %p844 = pneg %p267
        %p845 = scmp.lt.s32.totalorder %s49, 1
        %s846 = scalar_select %p845, %s49, 1
        %s847 = scalar_lea.vmem %s9, %s846
        %p848 = pneg %p296
        %p849 = pneg %p293
        %s850 = sand.u32 %s44, 1
        %s851 = scalar_lea.sflag [#allocation7], %s850
        %s852 = sand.u32 %s309, 1
        %s853 = scalar_lea.vmem [#allocation8], %s852
        %p854 = pneg %p322
        %p855 = pneg %p319
        %s856 = sand.u32 %s44, 1
        %s857 = scalar_lea.sflag [#allocation10], %s856
        %s858 = sand.u32 %s335, 1
        %s859 = scalar_lea.vmem [#allocation9], %s858
        %p860 = pneg %p348
        %p861 = pneg %p345
        %s862 = sand.u32 %s44, 1
        %s863 = scalar_lea.sflag [#allocation10], %s862
        %s864 = sand.u32 %s361, 1
        %s865 = smul.addr %s864, 16
        %s866 = scalar_lea.vmem [#allocation11], %s865
        %p867 = pneg %p374
        %p868 = pneg %p371
        %s869 = sand.u32 %s44, 1
        %s870 = scalar_lea.sflag [#allocation13], %s869
        %s871 = sand.u32 %s387, 1
        %s872 = scalar_lea.vmem [#allocation12], %s871
        %p873 = pneg %p400
        %p874 = pneg %p397
        %p875 = scmp.lt.s32.totalorder %s49, 1
        %s876 = scalar_select %p875, %s49, 1
        %s877 = smul.addr %s876, 8
        %s878 = smul.addr %s877, 4
        %s879 = scalar_lea.vmem %s14, %s878
        %p880 = pneg %p426
        %p881 = pneg %p423
        %s882 = sand.u32 %s44, 1
        %s883 = scalar_lea.sflag [#allocation13], %s882
        %s884 = sand.u32 %s439, 1
        %s885 = scalar_lea.vmem [#allocation14], %s884
        %p886 = pneg %p452
        %p887 = pneg %p449
        %p888 = pneg %p473
        %p889 = pneg %p470
        %p890 = pneg %p494
        %p891 = pneg %p491
        %p892 = pneg %p520
        %p893 = pneg %p517
        %s894 = sand.u32 %s507, 1
        %s895 = scalar_lea.sflag [#allocation5], %s894
        %s896 = sand.u32 %s507, 1
        %s897 = smul.addr %s896, 16
        %s898 = scalar_lea.vmem [#allocation15], %s897
        %p899 = scmp.lt.s32.totalorder %s49, 1
        %s900 = scalar_select %p899, %s49, 1
        %s901 = scalar_lea.vmem %s4, %s900
        %p902 = scmp.lt.s32.totalorder %s49, 1
        %s903 = scalar_select %p902, %s49, 1
        %s904 = scalar_lea.vmem %s5, %s903
        %p905 = scmp.lt.s32.totalorder %s49, 1
        %s906 = scalar_select %p905, %s49, 1
        %s907 = smul.addr %s906, 12
        %s908 = smul.addr %s907, 4
        %s909 = scalar_lea.vmem %s6, %s908
        %p910 = scmp.lt.s32.totalorder %s49, 1
        %s911 = scalar_select %p910, %s49, 1
        %s912 = smul.addr %s911, 3
        %s913 = scalar_lea.vmem %s7, %s912
        %p914 = scmp.lt.s32.totalorder %s49, 1
        %s915 = scalar_select %p914, %s49, 1
        %s916 = scalar_lea.vmem %s9, %s915
        %p917 = scmp.lt.s32.totalorder %s49, 1
        %s918 = scalar_select %p917, %s49, 1
        %s919 = smul.addr %s918, 8
        %s920 = smul.addr %s919, 4
        %s921 = scalar_lea.vmem %s14, %s920
        %p923 = scmp.eq.s32.totalorder %s49, 0
        // Predicated region
        $region121: #{tpu_custom_call.1} parent=91 // pred_check
          %p924 = pneg %p923
        $region122: #{tpu_custom_call.1} parent=91 // pred_check_branch
          %926 = sbr.rel (%p924) target = $region124
        $region123: #{tpu_custom_call.1} parent=91 // pred_region
          %v927 = vld [vmem:[%s740] sm:$0xff]
          %v928 = vld [vmem:[%s740 + $0x8] sm:$0xff]
          %v929 = vpack.c.bf16 %v928, %v927
          %v930 = vld [vmem:[%s1] sm:$0xf]
          %v931 = vld [vmem:[%s1 + $0x4] sm:$0xf]
          %v932 = vld [vmem:[%s1 + $0x8] sm:$0xf]
          %v933 = vld [vmem:[%s1 + $0xc] sm:$0xf]
          %v934 = vld [vmem:[%s1 + $0x10] sm:$0xf]
          %v935 = vld [vmem:[%s1 + $0x14] sm:$0xf]
          %v936 = vld [vmem:[%s1 + $0x18] sm:$0xf]
          %v937 = vld [vmem:[%s1 + $0x1c] sm:$0xf]
          %v938 = vld [vmem:[%s2] sm:$0x1]
          %v940 = vperm.slane %v938, 0
          %v950 = vunpack.c.l.b16 %v930
          %v951 = vunpack.c.l.b16 %v931
          %v952 = vunpack.c.l.b16 %v932
          %v953 = vunpack.c.l.b16 %v933
          %v954 = vunpack.c.l.b16 %v934
          %v955 = vunpack.c.l.b16 %v935
          %v956 = vunpack.c.l.b16 %v936
          %v957 = vunpack.c.l.b16 %v937
          %v958 = vpack.c.b16 %v951, %v950
          %v959 = vpack.c.b16 %v953, %v952
          %v960 = vpack.c.b16 %v955, %v954
          %v961 = vpack.c.b16 %v957, %v956
          %vm966 = vcmask 523264
          %v968 = vsel %vm966, %v929, 0
          %970 = vmatpush.bf16.msra.mxu0 0
          %971 = vmatpush.bf16.msra.mxu0 0
          %972 = vmatpush.bf16.msra.mxu0 0
          %973 = vmatpush.bf16.msra.mxu0 0
          %974 = vmatpush.bf16.msra.mxu0 %v961
          %975 = vmatpush.bf16.msra.mxu0 %v960
          %976 = vmatpush.bf16.msra.mxu0 %v959
          %977 = vmatpush.bf16.msra.mxu0 %v958
          %978 = vmatmul.bf16.gmra.mxu0 %v968
          %v979 = vpop.f32.mrf.mxu0
          %v980 = vadd.f32 %v940, %v979
          %v981 = vpop.f32.mrf.mxu0
          %v982 = vadd.f32 %v940, %v981
          %983 = vdwg.mxu0
          %v984 = vld [vmem:[%s3] sm:$0xff]
          %v985 = vld [vmem:[%s3 + $0x8] sm:$0xff]
          %v986 = vadd.f32 %v980, %v984
          %v987 = vadd.f32 %v982, %v985
          %vm988 = vcmask 261120
          %989 = vst.msk [vmem:[#allocation2] sm:$0xff] %vm988, %v986
          %990 = vst.msk [vmem:[#allocation2 + $0x8] sm:$0xff] %vm988, %v987
        $region124: #{tpu_custom_call.1} parent=91 // pred_fallthru
          _
        %v991 = vld [vmem:[#allocation2] sm:$0xff]
        %v992 = vld [vmem:[#allocation2 + $0x8] sm:$0xff]
        %v993 = vld [vmem:[%s901] sm:$0x1]
        %v994 = vld [vmem:[%s904] sm:$0x1]
        %vm995 = vcmask 261120
        %v996 = vsel %vm995, %v991, 0.0
        %997 = vadd.xlane.f32.xlu0 %v996
        %v998 = vpop.xlane.xlu0 %997
        %v999 = vsel %vm995, %v992, 0.0
        %1000 = vadd.xlane.f32.xlu0 %v999
        %v1001 = vpop.xlane.xlu0 %1000
        %v1002 = vrcp.pop 32.0
        %v1003 = vmul.f32 32.0, %v1002
        %v1004 = vsub.f32 1.0, %v1003
        %v1005 = vmul.f32 %v1002, %v1004
        %v1006 = vadd.f32 %v1002, %v1005
        %vm1007 = vweird.f32 %v1002
        %v1008 = vsel %vm1007, %v1002, %v1006
        %v1009 = vmul.f32 %v998, %v1008
        %v1010 = vmul.f32 %v1001, %v1008
        %v1011 = vsub.f32 %v991, %v1009
        %v1012 = vsub.f32 %v992, %v1010
        %v1013 = vmul.f32 %v1011, %v1011
        %v1014 = vmul.f32 %v1012, %v1012
        %v1015 = vsel %vm995, %v1013, 0.0
        %1016 = vadd.xlane.f32.xlu0 %v1015
        %v1017 = vpop.xlane.xlu0 %1016
        %v1018 = vsel %vm995, %v1014, 0.0
        %1019 = vadd.xlane.f32.xlu0 %v1018
        %v1020 = vpop.xlane.xlu0 %1019
        %v1021 = vmul.f32 %v1017, %v1008
        %v1022 = vmul.f32 %v1020, %v1008
        %v1023 = vadd.f32 %v1021, 1e-06
        %v1024 = vadd.f32 %v1022, 1e-06
        %v1025 = vrsqrt.pop %v1023
        %v1026 = vmul.f32 %v1025, %v1023
        %v1027 = vmul.f32 %v1026, %v1025
        %v1028 = vmul.f32 0.5, %v1027
        %v1029 = vsub.f32 1.5, %v1028
        %v1030 = vmul.f32 %v1025, %v1029
        %vm1031 = vweird.f32 %v1023
        %vm1032 = vweird.f32 %v1025
        %vm1033 = vmor %vm1031, %vm1032
        %v1034 = vsel %vm1033, %v1025, %v1030
        %v1035 = vrsqrt.pop %v1024
        %v1036 = vmul.f32 %v1035, %v1024
        %v1037 = vmul.f32 %v1036, %v1035
        %v1038 = vmul.f32 0.5, %v1037
        %v1039 = vsub.f32 1.5, %v1038
        %v1040 = vmul.f32 %v1035, %v1039
        %vm1041 = vweird.f32 %v1024
        %vm1042 = vweird.f32 %v1035
        %vm1043 = vmor %vm1041, %vm1042
        %v1044 = vsel %vm1043, %v1035, %v1040
        %v1045 = vmul.f32 %v1011, %v1034
        %v1046 = vmul.f32 %v1012, %v1044
        %v1048 = vperm.slane %v993, 0
        %v1050 = vmul.f32 %v1045, %v1048
        %v1051 = vmul.f32 %v1046, %v1048
        %v1053 = vperm.slane %v994, 0
        %v1055 = vadd.f32 %v1050, %v1053
        %v1056 = vadd.f32 %v1051, %v1053
        %v1057 = vpack.c.bf16 %v1056, %v1055
        %v1058 = vld [vmem:[%s909] sm:$0xf]
        %v1059 = vld [vmem:[%s909 + $0x4] sm:$0xf]
        %v1060 = vld [vmem:[%s909 + $0x8] sm:$0xf]
        %v1061 = vld [vmem:[%s909 + $0xc] sm:$0xf]
        %v1062 = vld [vmem:[%s909 + $0x10] sm:$0xf]
        %v1063 = vld [vmem:[%s909 + $0x14] sm:$0xf]
        %v1064 = vld [vmem:[%s909 + $0x18] sm:$0xf]
        %v1065 = vld [vmem:[%s909 + $0x1c] sm:$0xf]
        %v1066 = vld [vmem:[%s909 + $0x20] sm:$0xf]
        %v1067 = vld [vmem:[%s909 + $0x24] sm:$0xf]
        %v1068 = vld [vmem:[%s909 + $0x28] sm:$0xf]
        %v1069 = vld [vmem:[%s909 + $0x2c] sm:$0xf]
        %v1070 = vld [vmem:[%s913] sm:$0x1]
        %v1071 = vld [vmem:[%s913 + $0x1] sm:$0x1]
        %v1072 = vld [vmem:[%s913 + $0x2] sm:$0x1]
        %v1074 = vperm.slane %v1070, 0
        %v1080 = vunpack.c.l.b16 %v1058
        %v1081 = vunpack.c.l.b16 %v1059
        %v1082 = vunpack.c.l.b16 %v1060
        %v1083 = vunpack.c.l.b16 %v1061
        %v1084 = vpack.c.b16 %v1081, %v1080
        %v1085 = vpack.c.b16 %v1083, %v1082
        %v1089 = vsel %vm995, %v1057, 0
        %1091 = vmatpush.bf16.msra.mxu0 0
        %1092 = vmatpush.bf16.msra.mxu0 0
        %1093 = vmatpush.bf16.msra.mxu0 0
        %1094 = vmatpush.bf16.msra.mxu0 0
        %1095 = vmatpush.bf16.msra.mxu0 0
        %1096 = vmatpush.bf16.msra.mxu0 0
        %1097 = vmatpush.bf16.msra.mxu0 %v1085
        %1098 = vmatpush.bf16.msra.mxu0 %v1084
        %1099 = vmatmul.bf16.gmra.mxu0 %v1089
        %v1100 = vpop.f32.mrf.mxu0
        %v1101 = vadd.f32 %v1074, %v1100
        %v1102 = vpop.f32.mrf.mxu0
        %v1103 = vadd.f32 %v1074, %v1102
        %1104 = vdwg.mxu0
        %v1106 = vperm.slane %v1071, 0
        %v1112 = vunpack.c.l.b16 %v1062
        %v1113 = vunpack.c.l.b16 %v1063
        %v1114 = vunpack.c.l.b16 %v1064
        %v1115 = vunpack.c.l.b16 %v1065
        %v1116 = vpack.c.b16 %v1113, %v1112
        %v1117 = vpack.c.b16 %v1115, %v1114
        %1120 = vmatpush.bf16.msra.mxu0 0
        %1121 = vmatpush.bf16.msra.mxu0 0
        %1122 = vmatpush.bf16.msra.mxu0 0
        %1123 = vmatpush.bf16.msra.mxu0 0
        %1124 = vmatpush.bf16.msra.mxu0 0
        %1125 = vmatpush.bf16.msra.mxu0 0
        %1126 = vmatpush.bf16.msra.mxu0 %v1117
        %1127 = vmatpush.bf16.msra.mxu0 %v1116
        %1128 = vmatmul.bf16.gmra.mxu0 %v1089
        %v1129 = vpop.f32.mrf.mxu0
        %v1130 = vadd.f32 %v1106, %v1129
        %v1131 = vpop.f32.mrf.mxu0
        %v1132 = vadd.f32 %v1106, %v1131
        %1133 = vdwg.mxu0
        %v1135 = vperm.slane %v1072, 0
        %v1141 = vunpack.c.l.b16 %v1066
        %v1142 = vunpack.c.l.b16 %v1067
        %v1143 = vunpack.c.l.b16 %v1068
        %v1144 = vunpack.c.l.b16 %v1069
        %v1145 = vpack.c.b16 %v1142, %v1141
        %v1146 = vpack.c.b16 %v1144, %v1143
        %1149 = vmatpush.bf16.msra.mxu0 0
        %1150 = vmatpush.bf16.msra.mxu0 0
        %1151 = vmatpush.bf16.msra.mxu0 0
        %1152 = vmatpush.bf16.msra.mxu0 0
        %1153 = vmatpush.bf16.msra.mxu0 0
        %1154 = vmatpush.bf16.msra.mxu0 0
        %1155 = vmatpush.bf16.msra.mxu0 %v1146
        %1156 = vmatpush.bf16.msra.mxu0 %v1145
        %1157 = vmatmul.bf16.gmra.mxu0 %v1089
        %v1158 = vpop.f32.mrf.mxu0
        %v1159 = vadd.f32 %v1135, %v1158
        %v1160 = vpop.f32.mrf.mxu0
        %v1161 = vadd.f32 %v1135, %v1160
        %1162 = vdwg.mxu0
        %v1163 = vmul.f32 %v1101, 0.35355338
        %v1164 = vmul.f32 %v1103, 0.35355338
        %1167 = vrot.lane.b32.xlu0 %v1163, 120
        %v1168 = vpop.permute.xlu0 %1167
        %1169 = vrot.lane.b32.xlu0 %v1164, 120
        %v1170 = vpop.permute.xlu0 %1169
        %1173 = vrot.lane.b32.xlu0 %v1163, 112
        %v1174 = vpop.permute.xlu0 %1173
        %1175 = vrot.lane.b32.xlu0 %v1164, 112
        %v1176 = vpop.permute.xlu0 %1175
        %1179 = vrot.lane.b32.xlu0 %v1163, 104
        %v1180 = vpop.permute.xlu0 %1179
        %1181 = vrot.lane.b32.xlu0 %v1164, 104
        %v1182 = vpop.permute.xlu0 %1181
        %v1185 = vrot.slane %v1174, 4
        %vm1186 = vcmask 1047556
        %v1187 = vsel %vm1186, %v1185, %v1163
        %v1188 = vrot.slane %v1163, 4
        %v1189 = vsel %vm1186, %v1174, %v1188
        %v1191 = vunpack.c.l.s4 1983009808
        %v1192 = vunpack.c.0.s8 %v1191
        %v1193 = vperm.slane %v1187, %v1192
        %v1195 = vunpack.c.l.s4 1983009808
        %v1196 = vunpack.c.0.s8 %v1195
        %v1197 = vperm.slane %v1189, %v1196
        %v1198 = vrot.slane %v1180, 4
        %v1199 = vsel %vm1186, %v1198, %v1168
        %v1200 = vrot.slane %v1168, 4
        %v1201 = vsel %vm1186, %v1180, %v1200
        %v1203 = vunpack.c.l.s4 1983009808
        %v1204 = vunpack.c.0.s8 %v1203
        %v1205 = vperm.slane %v1199, %v1204
        %v1207 = vunpack.c.l.s4 1983009808
        %v1208 = vunpack.c.0.s8 %v1207
        %v1209 = vperm.slane %v1201, %v1208
        %v1210 = vrot.slane %v1205, 4
        %v1211 = vsel %vm1186, %v1210, %v1193
        %v1212 = vrot.slane %v1193, 4
        %v1213 = vsel %vm1186, %v1205, %v1212
        %v1215 = vunpack.c.l.s4 1934713408
        %v1216 = vunpack.c.0.s8 %v1215
        %v1217 = vperm.slane %v1211, %v1216
        %v1219 = vunpack.c.l.s4 1934713408
        %v1220 = vunpack.c.0.s8 %v1219
        %v1221 = vperm.slane %v1213, %v1220
        %v1222 = vrot.slane %v1209, 4
        %v1223 = vsel %vm1186, %v1222, %v1197
        %v1224 = vrot.slane %v1197, 4
        %v1225 = vsel %vm1186, %v1209, %v1224
        %v1227 = vunpack.c.l.s4 1934713408
        %v1228 = vunpack.c.0.s8 %v1227
        %v1229 = vperm.slane %v1223, %v1228
        %v1231 = vunpack.c.l.s4 1934713408
        %v1232 = vunpack.c.0.s8 %v1231
        %v1233 = vperm.slane %v1225, %v1232
        %v1234 = vrot.slane %v1217, 4
        %v1235 = vsel %vm1186, 0.0, %v1234
        %v1236 = vrot.slane %v1221, 4
        %v1237 = vsel %vm1186, 0.0, %v1236
        %v1238 = vrot.slane %v1229, 4
        %v1239 = vsel %vm1186, 0.0, %v1238
        %v1240 = vrot.slane %v1233, 4
        %v1241 = vsel %vm1186, 0.0, %v1240
        %v1242 = vrot.slane %v1176, 4
        %v1243 = vsel %vm1186, %v1242, %v1164
        %v1244 = vrot.slane %v1164, 4
        %v1245 = vsel %vm1186, %v1176, %v1244
        %v1247 = vunpack.c.l.s4 1983009808
        %v1248 = vunpack.c.0.s8 %v1247
        %v1249 = vperm.slane %v1243, %v1248
        %v1251 = vunpack.c.l.s4 1983009808
        %v1252 = vunpack.c.0.s8 %v1251
        %v1253 = vperm.slane %v1245, %v1252
        %v1254 = vrot.slane %v1182, 4
        %v1255 = vsel %vm1186, %v1254, %v1170
        %v1256 = vrot.slane %v1170, 4
        %v1257 = vsel %vm1186, %v1182, %v1256
        %v1259 = vunpack.c.l.s4 1983009808
        %v1260 = vunpack.c.0.s8 %v1259
        %v1261 = vperm.slane %v1255, %v1260
        %v1263 = vunpack.c.l.s4 1983009808
        %v1264 = vunpack.c.0.s8 %v1263
        %v1265 = vperm.slane %v1257, %v1264
        %v1266 = vrot.slane %v1261, 4
        %v1267 = vsel %vm1186, %v1266, %v1249
        %v1268 = vrot.slane %v1249, 4
        %v1269 = vsel %vm1186, %v1261, %v1268
        %v1271 = vunpack.c.l.s4 1934713408
        %v1272 = vunpack.c.0.s8 %v1271
        %v1273 = vperm.slane %v1267, %v1272
        %v1275 = vunpack.c.l.s4 1934713408
        %v1276 = vunpack.c.0.s8 %v1275
        %v1277 = vperm.slane %v1269, %v1276
        %v1278 = vrot.slane %v1265, 4
        %v1279 = vsel %vm1186, %v1278, %v1253
        %v1280 = vrot.slane %v1253, 4
        %v1281 = vsel %vm1186, %v1265, %v1280
        %v1283 = vunpack.c.l.s4 1934713408
        %v1284 = vunpack.c.0.s8 %v1283
        %v1285 = vperm.slane %v1279, %v1284
        %v1287 = vunpack.c.l.s4 1934713408
        %v1288 = vunpack.c.0.s8 %v1287
        %v1289 = vperm.slane %v1281, %v1288
        %v1290 = vrot.slane %v1273, 4
        %v1291 = vsel %vm1186, 0.0, %v1290
        %v1292 = vrot.slane %v1277, 4
        %v1293 = vsel %vm1186, 0.0, %v1292
        %v1294 = vrot.slane %v1285, 4
        %v1295 = vsel %vm1186, 0.0, %v1294
        %v1296 = vrot.slane %v1289, 4
        %v1297 = vsel %vm1186, 0.0, %v1296
        %v1298 = vsel %vm1186, %v1236, %v1217
        %v1300 = vunpack.c.l.s4 1983009808
        %v1301 = vunpack.c.0.s8 %v1300
        %v1302 = vperm.slane %v1298, %v1301
        %v1303 = vrot.slane %v1237, 4
        %v1304 = vsel %vm1186, %v1303, %v1235
        %v1306 = vunpack.c.l.s4 1983009808
        %v1307 = vunpack.c.0.s8 %v1306
        %v1308 = vperm.slane %v1304, %v1307
        %v1309 = vsel %vm1186, %v1240, %v1229
        %v1311 = vunpack.c.l.s4 1983009808
        %v1312 = vunpack.c.0.s8 %v1311
        %v1313 = vperm.slane %v1309, %v1312
        %v1314 = vrot.slane %v1241, 4
        %v1315 = vsel %vm1186, %v1314, %v1239
        %v1317 = vunpack.c.l.s4 1983009808
        %v1318 = vunpack.c.0.s8 %v1317
        %v1319 = vperm.slane %v1315, %v1318
        %v1320 = vrot.slane %v1308, 4
        %v1321 = vsel %vm1186, %v1320, %v1302
        %v1322 = vrot.slane %v1302, 4
        %v1323 = vsel %vm1186, %v1308, %v1322
        %v1325 = vunpack.c.l.s4 1934713408
        %v1326 = vunpack.c.0.s8 %v1325
        %v1327 = vperm.slane %v1321, %v1326
        %v1329 = vunpack.c.l.s4 1934713408
        %v1330 = vunpack.c.0.s8 %v1329
        %v1331 = vperm.slane %v1323, %v1330
        %v1332 = vrot.slane %v1319, 4
        %v1333 = vsel %vm1186, %v1332, %v1313
        %v1334 = vrot.slane %v1313, 4
        %v1335 = vsel %vm1186, %v1319, %v1334
        %v1337 = vunpack.c.l.s4 1934713408
        %v1338 = vunpack.c.0.s8 %v1337
        %v1339 = vperm.slane %v1333, %v1338
        %v1341 = vunpack.c.l.s4 1934713408
        %v1342 = vunpack.c.0.s8 %v1341
        %v1343 = vperm.slane %v1335, %v1342
        %v1344 = vrot.slane %v1339, 4
        %v1345 = vsel %vm1186, %v1344, %v1327
        %v1346 = vrot.slane %v1327, 4
        %v1347 = vsel %vm1186, %v1339, %v1346
        %v1348 = vrot.slane %v1343, 4
        %v1349 = vsel %vm1186, %v1348, %v1331
        %v1350 = vrot.slane %v1331, 4
        %v1351 = vsel %vm1186, %v1343, %v1350
        %v1352 = vsel %vm1186, %v1292, %v1273
        %v1354 = vunpack.c.l.s4 1983009808
        %v1355 = vunpack.c.0.s8 %v1354
        %v1356 = vperm.slane %v1352, %v1355
        %v1357 = vrot.slane %v1293, 4
        %v1358 = vsel %vm1186, %v1357, %v1291
        %v1360 = vunpack.c.l.s4 1983009808
        %v1361 = vunpack.c.0.s8 %v1360
        %v1362 = vperm.slane %v1358, %v1361
        %v1363 = vsel %vm1186, %v1296, %v1285
        %v1365 = vunpack.c.l.s4 1983009808
        %v1366 = vunpack.c.0.s8 %v1365
        %v1367 = vperm.slane %v1363, %v1366
        %v1368 = vrot.slane %v1297, 4
        %v1369 = vsel %vm1186, %v1368, %v1295
        %v1371 = vunpack.c.l.s4 1983009808
        %v1372 = vunpack.c.0.s8 %v1371
        %v1373 = vperm.slane %v1369, %v1372
        %v1374 = vrot.slane %v1362, 4
        %v1375 = vsel %vm1186, %v1374, %v1356
        %v1376 = vrot.slane %v1356, 4
        %v1377 = vsel %vm1186, %v1362, %v1376
        %v1379 = vunpack.c.l.s4 1934713408
        %v1380 = vunpack.c.0.s8 %v1379
        %v1381 = vperm.slane %v1375, %v1380
        %v1383 = vunpack.c.l.s4 1934713408
        %v1384 = vunpack.c.0.s8 %v1383
        %v1385 = vperm.slane %v1377, %v1384
        %v1386 = vrot.slane %v1373, 4
        %v1387 = vsel %vm1186, %v1386, %v1367
        %v1388 = vrot.slane %v1367, 4
        %v1389 = vsel %vm1186, %v1373, %v1388
        %v1391 = vunpack.c.l.s4 1934713408
        %v1392 = vunpack.c.0.s8 %v1391
        %v1393 = vperm.slane %v1387, %v1392
        %v1395 = vunpack.c.l.s4 1934713408
        %v1396 = vunpack.c.0.s8 %v1395
        %v1397 = vperm.slane %v1389, %v1396
        %v1398 = vrot.slane %v1393, 4
        %v1399 = vsel %vm1186, %v1398, %v1381
        %v1400 = vrot.slane %v1381, 4
        %v1401 = vsel %vm1186, %v1393, %v1400
        %v1402 = vrot.slane %v1397, 4
        %v1403 = vsel %vm1186, %v1402, %v1385
        %v1404 = vrot.slane %v1385, 4
        %v1405 = vsel %vm1186, %v1397, %v1404
        %v1406 = vpack.c.bf16 %v1345, %v1345
        %v1407 = vpack.c.bf16 %v1399, %v1399
        %v1408 = vpack.c.bf16 %v1347, %v1347
        %v1409 = vpack.c.bf16 %v1401, %v1401
        %v1410 = vpack.c.bf16 %v1349, %v1349
        %v1411 = vpack.c.bf16 %v1403, %v1403
        %v1412 = vpack.c.bf16 %v1351, %v1351
        %v1413 = vpack.c.bf16 %v1405, %v1405
        %1416 = vrot.lane.b32.xlu0 %v1130, 120
        %v1417 = vpop.permute.xlu0 %1416
        %1418 = vrot.lane.b32.xlu0 %v1132, 120
        %v1419 = vpop.permute.xlu0 %1418
        %1422 = vrot.lane.b32.xlu0 %v1130, 112
        %v1423 = vpop.permute.xlu0 %1422
        %1424 = vrot.lane.b32.xlu0 %v1132, 112
        %v1425 = vpop.permute.xlu0 %1424
        %1428 = vrot.lane.b32.xlu0 %v1130, 104
        %v1429 = vpop.permute.xlu0 %1428
        %1430 = vrot.lane.b32.xlu0 %v1132, 104
        %v1431 = vpop.permute.xlu0 %1430
        %v1434 = vrot.slane %v1423, 4
        %v1435 = vsel %vm1186, %v1434, %v1130
        %v1436 = vrot.slane %v1130, 4
        %v1437 = vsel %vm1186, %v1423, %v1436
        %v1439 = vunpack.c.l.s4 1983009808
        %v1440 = vunpack.c.0.s8 %v1439
        %v1441 = vperm.slane %v1435, %v1440
        %v1443 = vunpack.c.l.s4 1983009808
        %v1444 = vunpack.c.0.s8 %v1443
        %v1445 = vperm.slane %v1437, %v1444
        %v1446 = vrot.slane %v1429, 4
        %v1447 = vsel %vm1186, %v1446, %v1417
        %v1448 = vrot.slane %v1417, 4
        %v1449 = vsel %vm1186, %v1429, %v1448
        %v1451 = vunpack.c.l.s4 1983009808
        %v1452 = vunpack.c.0.s8 %v1451
        %v1453 = vperm.slane %v1447, %v1452
        %v1455 = vunpack.c.l.s4 1983009808
        %v1456 = vunpack.c.0.s8 %v1455
        %v1457 = vperm.slane %v1449, %v1456
        %v1458 = vrot.slane %v1453, 4
        %v1459 = vsel %vm1186, %v1458, %v1441
        %v1460 = vrot.slane %v1441, 4
        %v1461 = vsel %vm1186, %v1453, %v1460
        %v1463 = vunpack.c.l.s4 1934713408
        %v1464 = vunpack.c.0.s8 %v1463
        %v1465 = vperm.slane %v1459, %v1464
        %v1467 = vunpack.c.l.s4 1934713408
        %v1468 = vunpack.c.0.s8 %v1467
        %v1469 = vperm.slane %v1461, %v1468
        %v1470 = vrot.slane %v1457, 4
        %v1471 = vsel %vm1186, %v1470, %v1445
        %v1472 = vrot.slane %v1445, 4
        %v1473 = vsel %vm1186, %v1457, %v1472
        %v1475 = vunpack.c.l.s4 1934713408
        %v1476 = vunpack.c.0.s8 %v1475
        %v1477 = vperm.slane %v1471, %v1476
        %v1479 = vunpack.c.l.s4 1934713408
        %v1480 = vunpack.c.0.s8 %v1479
        %v1481 = vperm.slane %v1473, %v1480
        %v1482 = vrot.slane %v1465, 4
        %v1483 = vsel %vm1186, 0.0, %v1482
        %v1484 = vrot.slane %v1469, 4
        %v1485 = vsel %vm1186, 0.0, %v1484
        %v1486 = vrot.slane %v1477, 4
        %v1487 = vsel %vm1186, 0.0, %v1486
        %v1488 = vrot.slane %v1481, 4
        %v1489 = vsel %vm1186, 0.0, %v1488
        %v1490 = vrot.slane %v1425, 4
        %v1491 = vsel %vm1186, %v1490, %v1132
        %v1492 = vrot.slane %v1132, 4
        %v1493 = vsel %vm1186, %v1425, %v1492
        %v1495 = vunpack.c.l.s4 1983009808
        %v1496 = vunpack.c.0.s8 %v1495
        %v1497 = vperm.slane %v1491, %v1496
        %v1499 = vunpack.c.l.s4 1983009808
        %v1500 = vunpack.c.0.s8 %v1499
        %v1501 = vperm.slane %v1493, %v1500
        %v1502 = vrot.slane %v1431, 4
        %v1503 = vsel %vm1186, %v1502, %v1419
        %v1504 = vrot.slane %v1419, 4
        %v1505 = vsel %vm1186, %v1431, %v1504
        %v1507 = vunpack.c.l.s4 1983009808
        %v1508 = vunpack.c.0.s8 %v1507
        %v1509 = vperm.slane %v1503, %v1508
        %v1511 = vunpack.c.l.s4 1983009808
        %v1512 = vunpack.c.0.s8 %v1511
        %v1513 = vperm.slane %v1505, %v1512
        %v1514 = vrot.slane %v1509, 4
        %v1515 = vsel %vm1186, %v1514, %v1497
        %v1516 = vrot.slane %v1497, 4
        %v1517 = vsel %vm1186, %v1509, %v1516
        %v1519 = vunpack.c.l.s4 1934713408
        %v1520 = vunpack.c.0.s8 %v1519
        %v1521 = vperm.slane %v1515, %v1520
        %v1523 = vunpack.c.l.s4 1934713408
        %v1524 = vunpack.c.0.s8 %v1523
        %v1525 = vperm.slane %v1517, %v1524
        %v1526 = vrot.slane %v1513, 4
        %v1527 = vsel %vm1186, %v1526, %v1501
        %v1528 = vrot.slane %v1501, 4
        %v1529 = vsel %vm1186, %v1513, %v1528
        %v1531 = vunpack.c.l.s4 1934713408
        %v1532 = vunpack.c.0.s8 %v1531
        %v1533 = vperm.slane %v1527, %v1532
        %v1535 = vunpack.c.l.s4 1934713408
        %v1536 = vunpack.c.0.s8 %v1535
        %v1537 = vperm.slane %v1529, %v1536
        %v1538 = vrot.slane %v1521, 4
        %v1539 = vsel %vm1186, 0.0, %v1538
        %v1540 = vrot.slane %v1525, 4
        %v1541 = vsel %vm1186, 0.0, %v1540
        %v1542 = vrot.slane %v1533, 4
        %v1543 = vsel %vm1186, 0.0, %v1542
        %v1544 = vrot.slane %v1537, 4
        %v1545 = vsel %vm1186, 0.0, %v1544
        %v1546 = vsel %vm1186, %v1484, %v1465
        %v1548 = vunpack.c.l.s4 1983009808
        %v1549 = vunpack.c.0.s8 %v1548
        %v1550 = vperm.slane %v1546, %v1549
        %v1551 = vrot.slane %v1485, 4
        %v1552 = vsel %vm1186, %v1551, %v1483
        %v1554 = vunpack.c.l.s4 1983009808
        %v1555 = vunpack.c.0.s8 %v1554
        %v1556 = vperm.slane %v1552, %v1555
        %v1557 = vsel %vm1186, %v1488, %v1477
        %v1559 = vunpack.c.l.s4 1983009808
        %v1560 = vunpack.c.0.s8 %v1559
        %v1561 = vperm.slane %v1557, %v1560
        %v1562 = vrot.slane %v1489, 4
        %v1563 = vsel %vm1186, %v1562, %v1487
        %v1565 = vunpack.c.l.s4 1983009808
        %v1566 = vunpack.c.0.s8 %v1565
        %v1567 = vperm.slane %v1563, %v1566
        %v1568 = vrot.slane %v1556, 4
        %v1569 = vsel %vm1186, %v1568, %v1550
        %v1570 = vrot.slane %v1550, 4
        %v1571 = vsel %vm1186, %v1556, %v1570
        %v1573 = vunpack.c.l.s4 1934713408
        %v1574 = vunpack.c.0.s8 %v1573
        %v1575 = vperm.slane %v1569, %v1574
        %v1577 = vunpack.c.l.s4 1934713408
        %v1578 = vunpack.c.0.s8 %v1577
        %v1579 = vperm.slane %v1571, %v1578
        %v1580 = vrot.slane %v1567, 4
        %v1581 = vsel %vm1186, %v1580, %v1561
        %v1582 = vrot.slane %v1561, 4
        %v1583 = vsel %vm1186, %v1567, %v1582
        %v1585 = vunpack.c.l.s4 1934713408
        %v1586 = vunpack.c.0.s8 %v1585
        %v1587 = vperm.slane %v1581, %v1586
        %v1589 = vunpack.c.l.s4 1934713408
        %v1590 = vunpack.c.0.s8 %v1589
        %v1591 = vperm.slane %v1583, %v1590
        %v1592 = vrot.slane %v1587, 4
        %v1593 = vsel %vm1186, %v1592, %v1575
        %v1594 = vrot.slane %v1575, 4
        %v1595 = vsel %vm1186, %v1587, %v1594
        %v1596 = vrot.slane %v1591, 4
        %v1597 = vsel %vm1186, %v1596, %v1579
        %v1598 = vrot.slane %v1579, 4
        %v1599 = vsel %vm1186, %v1591, %v1598
        %v1600 = vsel %vm1186, %v1540, %v1521
        %v1602 = vunpack.c.l.s4 1983009808
        %v1603 = vunpack.c.0.s8 %v1602
        %v1604 = vperm.slane %v1600, %v1603
        %v1605 = vrot.slane %v1541, 4
        %v1606 = vsel %vm1186, %v1605, %v1539
        %v1608 = vunpack.c.l.s4 1983009808
        %v1609 = vunpack.c.0.s8 %v1608
        %v1610 = vperm.slane %v1606, %v1609
        %v1611 = vsel %vm1186, %v1544, %v1533
        %v1613 = vunpack.c.l.s4 1983009808
        %v1614 = vunpack.c.0.s8 %v1613
        %v1615 = vperm.slane %v1611, %v1614
        %v1616 = vrot.slane %v1545, 4
        %v1617 = vsel %vm1186, %v1616, %v1543
        %v1619 = vunpack.c.l.s4 1983009808
        %v1620 = vunpack.c.0.s8 %v1619
        %v1621 = vperm.slane %v1617, %v1620
        %v1622 = vrot.slane %v1610, 4
        %v1623 = vsel %vm1186, %v1622, %v1604
        %v1624 = vrot.slane %v1604, 4
        %v1625 = vsel %vm1186, %v1610, %v1624
        %v1627 = vunpack.c.l.s4 1934713408
        %v1628 = vunpack.c.0.s8 %v1627
        %v1629 = vperm.slane %v1623, %v1628
        %v1631 = vunpack.c.l.s4 1934713408
        %v1632 = vunpack.c.0.s8 %v1631
        %v1633 = vperm.slane %v1625, %v1632
        %v1634 = vrot.slane %v1621, 4
        %v1635 = vsel %vm1186, %v1634, %v1615
        %v1636 = vrot.slane %v1615, 4
        %v1637 = vsel %vm1186, %v1621, %v1636
        %v1639 = vunpack.c.l.s4 1934713408
        %v1640 = vunpack.c.0.s8 %v1639
        %v1641 = vperm.slane %v1635, %v1640
        %v1643 = vunpack.c.l.s4 1934713408
        %v1644 = vunpack.c.0.s8 %v1643
        %v1645 = vperm.slane %v1637, %v1644
        %v1646 = vrot.slane %v1641, 4
        %v1647 = vsel %vm1186, %v1646, %v1629
        %v1648 = vrot.slane %v1629, 4
        %v1649 = vsel %vm1186, %v1641, %v1648
        %v1650 = vrot.slane %v1645, 4
        %v1651 = vsel %vm1186, %v1650, %v1633
        %v1652 = vrot.slane %v1633, 4
        %v1653 = vsel %vm1186, %v1645, %v1652
        %v1654 = vpack.c.bf16 %v1593, %v1593
        %v1655 = vpack.c.bf16 %v1647, %v1647
        %v1656 = vpack.c.bf16 %v1595, %v1595
        %v1657 = vpack.c.bf16 %v1649, %v1649
        %v1658 = vpack.c.bf16 %v1597, %v1597
        %v1659 = vpack.c.bf16 %v1651, %v1651
        %v1660 = vpack.c.bf16 %v1599, %v1599
        %v1661 = vpack.c.bf16 %v1653, %v1653
        %1664 = vrot.lane.b32.xlu0 %v1159, 120
        %v1665 = vpop.permute.xlu0 %1664
        %1666 = vrot.lane.b32.xlu0 %v1161, 120
        %v1667 = vpop.permute.xlu0 %1666
        %1670 = vrot.lane.b32.xlu0 %v1159, 112
        %v1671 = vpop.permute.xlu0 %1670
        %1672 = vrot.lane.b32.xlu0 %v1161, 112
        %v1673 = vpop.permute.xlu0 %1672
        %1676 = vrot.lane.b32.xlu0 %v1159, 104
        %v1677 = vpop.permute.xlu0 %1676
        %1678 = vrot.lane.b32.xlu0 %v1161, 104
        %v1679 = vpop.permute.xlu0 %1678
        %v1682 = vrot.slane %v1671, 4
        %v1683 = vsel %vm1186, %v1682, %v1159
        %v1684 = vrot.slane %v1159, 4
        %v1685 = vsel %vm1186, %v1671, %v1684
        %v1687 = vunpack.c.l.s4 1983009808
        %v1688 = vunpack.c.0.s8 %v1687
        %v1689 = vperm.slane %v1683, %v1688
        %v1691 = vunpack.c.l.s4 1983009808
        %v1692 = vunpack.c.0.s8 %v1691
        %v1693 = vperm.slane %v1685, %v1692
        %v1694 = vrot.slane %v1677, 4
        %v1695 = vsel %vm1186, %v1694, %v1665
        %v1696 = vrot.slane %v1665, 4
        %v1697 = vsel %vm1186, %v1677, %v1696
        %v1699 = vunpack.c.l.s4 1983009808
        %v1700 = vunpack.c.0.s8 %v1699
        %v1701 = vperm.slane %v1695, %v1700
        %v1703 = vunpack.c.l.s4 1983009808
        %v1704 = vunpack.c.0.s8 %v1703
        %v1705 = vperm.slane %v1697, %v1704
        %v1706 = vrot.slane %v1701, 4
        %v1707 = vsel %vm1186, %v1706, %v1689
        %v1708 = vrot.slane %v1689, 4
        %v1709 = vsel %vm1186, %v1701, %v1708
        %v1711 = vunpack.c.l.s4 1934713408
        %v1712 = vunpack.c.0.s8 %v1711
        %v1713 = vperm.slane %v1707, %v1712
        %v1715 = vunpack.c.l.s4 1934713408
        %v1716 = vunpack.c.0.s8 %v1715
        %v1717 = vperm.slane %v1709, %v1716
        %v1718 = vrot.slane %v1705, 4
        %v1719 = vsel %vm1186, %v1718, %v1693
        %v1720 = vrot.slane %v1693, 4
        %v1721 = vsel %vm1186, %v1705, %v1720
        %v1723 = vunpack.c.l.s4 1934713408
        %v1724 = vunpack.c.0.s8 %v1723
        %v1725 = vperm.slane %v1719, %v1724
        %v1727 = vunpack.c.l.s4 1934713408
        %v1728 = vunpack.c.0.s8 %v1727
        %v1729 = vperm.slane %v1721, %v1728
        %v1730 = vrot.slane %v1713, 4
        %v1731 = vsel %vm1186, 0.0, %v1730
        %v1732 = vrot.slane %v1717, 4
        %v1733 = vsel %vm1186, 0.0, %v1732
        %v1734 = vrot.slane %v1725, 4
        %v1735 = vsel %vm1186, 0.0, %v1734
        %v1736 = vrot.slane %v1729, 4
        %v1737 = vsel %vm1186, 0.0, %v1736
        %v1738 = vrot.slane %v1673, 4
        %v1739 = vsel %vm1186, %v1738, %v1161
        %v1740 = vrot.slane %v1161, 4
        %v1741 = vsel %vm1186, %v1673, %v1740
        %v1743 = vunpack.c.l.s4 1983009808
        %v1744 = vunpack.c.0.s8 %v1743
        %v1745 = vperm.slane %v1739, %v1744
        %v1747 = vunpack.c.l.s4 1983009808
        %v1748 = vunpack.c.0.s8 %v1747
        %v1749 = vperm.slane %v1741, %v1748
        %v1750 = vrot.slane %v1679, 4
        %v1751 = vsel %vm1186, %v1750, %v1667
        %v1752 = vrot.slane %v1667, 4
        %v1753 = vsel %vm1186, %v1679, %v1752
        %v1755 = vunpack.c.l.s4 1983009808
        %v1756 = vunpack.c.0.s8 %v1755
        %v1757 = vperm.slane %v1751, %v1756
        %v1759 = vunpack.c.l.s4 1983009808
        %v1760 = vunpack.c.0.s8 %v1759
        %v1761 = vperm.slane %v1753, %v1760
        %v1762 = vrot.slane %v1757, 4
        %v1763 = vsel %vm1186, %v1762, %v1745
        %v1764 = vrot.slane %v1745, 4
        %v1765 = vsel %vm1186, %v1757, %v1764
        %v1767 = vunpack.c.l.s4 1934713408
        %v1768 = vunpack.c.0.s8 %v1767
        %v1769 = vperm.slane %v1763, %v1768
        %v1771 = vunpack.c.l.s4 1934713408
        %v1772 = vunpack.c.0.s8 %v1771
        %v1773 = vperm.slane %v1765, %v1772
        %v1774 = vrot.slane %v1761, 4
        %v1775 = vsel %vm1186, %v1774, %v1749
        %v1776 = vrot.slane %v1749, 4
        %v1777 = vsel %vm1186, %v1761, %v1776
        %v1779 = vunpack.c.l.s4 1934713408
        %v1780 = vunpack.c.0.s8 %v1779
        %v1781 = vperm.slane %v1775, %v1780
        %v1783 = vunpack.c.l.s4 1934713408
        %v1784 = vunpack.c.0.s8 %v1783
        %v1785 = vperm.slane %v1777, %v1784
        %v1786 = vrot.slane %v1769, 4
        %v1787 = vsel %vm1186, 0.0, %v1786
        %v1788 = vrot.slane %v1773, 4
        %v1789 = vsel %vm1186, 0.0, %v1788
        %v1790 = vrot.slane %v1781, 4
        %v1791 = vsel %vm1186, 0.0, %v1790
        %v1792 = vrot.slane %v1785, 4
        %v1793 = vsel %vm1186, 0.0, %v1792
        %v1794 = vsel %vm1186, %v1732, %v1713
        %v1796 = vunpack.c.l.s4 1983009808
        %v1797 = vunpack.c.0.s8 %v1796
        %v1798 = vperm.slane %v1794, %v1797
        %v1799 = vrot.slane %v1733, 4
        %v1800 = vsel %vm1186, %v1799, %v1731
        %v1802 = vunpack.c.l.s4 1983009808
        %v1803 = vunpack.c.0.s8 %v1802
        %v1804 = vperm.slane %v1800, %v1803
        %v1805 = vsel %vm1186, %v1736, %v1725
        %v1807 = vunpack.c.l.s4 1983009808
        %v1808 = vunpack.c.0.s8 %v1807
        %v1809 = vperm.slane %v1805, %v1808
        %v1810 = vrot.slane %v1737, 4
        %v1811 = vsel %vm1186, %v1810, %v1735
        %v1813 = vunpack.c.l.s4 1983009808
        %v1814 = vunpack.c.0.s8 %v1813
        %v1815 = vperm.slane %v1811, %v1814
        %v1816 = vrot.slane %v1804, 4
        %v1817 = vsel %vm1186, %v1816, %v1798
        %v1818 = vrot.slane %v1798, 4
        %v1819 = vsel %vm1186, %v1804, %v1818
        %v1821 = vunpack.c.l.s4 1934713408
        %v1822 = vunpack.c.0.s8 %v1821
        %v1823 = vperm.slane %v1817, %v1822
        %v1825 = vunpack.c.l.s4 1934713408
        %v1826 = vunpack.c.0.s8 %v1825
        %v1827 = vperm.slane %v1819, %v1826
        %v1828 = vrot.slane %v1815, 4
        %v1829 = vsel %vm1186, %v1828, %v1809
        %v1830 = vrot.slane %v1809, 4
        %v1831 = vsel %vm1186, %v1815, %v1830
        %v1833 = vunpack.c.l.s4 1934713408
        %v1834 = vunpack.c.0.s8 %v1833
        %v1835 = vperm.slane %v1829, %v1834
        %v1837 = vunpack.c.l.s4 1934713408
        %v1838 = vunpack.c.0.s8 %v1837
        %v1839 = vperm.slane %v1831, %v1838
        %v1840 = vrot.slane %v1835, 4
        %v1841 = vsel %vm1186, %v1840, %v1823
        %v1842 = vrot.slane %v1823, 4
        %v1843 = vsel %vm1186, %v1835, %v1842
        %v1844 = vrot.slane %v1839, 4
        %v1845 = vsel %vm1186, %v1844, %v1827
        %v1846 = vrot.slane %v1827, 4
        %v1847 = vsel %vm1186, %v1839, %v1846
        %v1848 = vsel %vm1186, %v1788, %v1769
        %v1850 = vunpack.c.l.s4 1983009808
        %v1851 = vunpack.c.0.s8 %v1850
        %v1852 = vperm.slane %v1848, %v1851
        %v1853 = vrot.slane %v1789, 4
        %v1854 = vsel %vm1186, %v1853, %v1787
        %v1856 = vunpack.c.l.s4 1983009808
        %v1857 = vunpack.c.0.s8 %v1856
        %v1858 = vperm.slane %v1854, %v1857
        %v1859 = vsel %vm1186, %v1792, %v1781
        %v1861 = vunpack.c.l.s4 1983009808
        %v1862 = vunpack.c.0.s8 %v1861
        %v1863 = vperm.slane %v1859, %v1862
        %v1864 = vrot.slane %v1793, 4
        %v1865 = vsel %vm1186, %v1864, %v1791
        %v1867 = vunpack.c.l.s4 1983009808
        %v1868 = vunpack.c.0.s8 %v1867
        %v1869 = vperm.slane %v1865, %v1868
        %v1870 = vrot.slane %v1858, 4
        %v1871 = vsel %vm1186, %v1870, %v1852
        %v1872 = vrot.slane %v1852, 4
        %v1873 = vsel %vm1186, %v1858, %v1872
        %v1875 = vunpack.c.l.s4 1934713408
        %v1876 = vunpack.c.0.s8 %v1875
        %v1877 = vperm.slane %v1871, %v1876
        %v1879 = vunpack.c.l.s4 1934713408
        %v1880 = vunpack.c.0.s8 %v1879
        %v1881 = vperm.slane %v1873, %v1880
        %v1882 = vrot.slane %v1869, 4
        %v1883 = vsel %vm1186, %v1882, %v1863
        %v1884 = vrot.slane %v1863, 4
        %v1885 = vsel %vm1186, %v1869, %v1884
        %v1887 = vunpack.c.l.s4 1934713408
        %v1888 = vunpack.c.0.s8 %v1887
        %v1889 = vperm.slane %v1883, %v1888
        %v1891 = vunpack.c.l.s4 1934713408
        %v1892 = vunpack.c.0.s8 %v1891
        %v1893 = vperm.slane %v1885, %v1892
        %v1894 = vrot.slane %v1889, 4
        %v1895 = vsel %vm1186, %v1894, %v1877
        %v1896 = vrot.slane %v1877, 4
        %v1897 = vsel %vm1186, %v1889, %v1896
        %v1898 = vrot.slane %v1893, 4
        %v1899 = vsel %vm1186, %v1898, %v1881
        %v1900 = vrot.slane %v1881, 4
        %v1901 = vsel %vm1186, %v1893, %v1900
        %v1902 = vpack.c.bf16 %v1841, %v1841
        %v1903 = vpack.c.bf16 %v1895, %v1895
        %v1904 = vpack.c.bf16 %v1843, %v1843
        %v1905 = vpack.c.bf16 %v1897, %v1897
        %v1906 = vpack.c.bf16 %v1845, %v1845
        %v1907 = vpack.c.bf16 %v1899, %v1899
        %v1908 = vpack.c.bf16 %v1847, %v1847
        %v1909 = vpack.c.bf16 %v1901, %v1901
        %v1912 = vunpack.c.l.b16 %v1406
        %v1913 = vunpack.c.l.b16 %v1407
        %v1914 = vpack.c.b16 %v1913, %v1912
        %v1917 = vunpack.c.l.b16 %v1654
        %v1918 = vunpack.c.l.b16 %v1655
        %v1919 = vpack.c.b16 %v1918, %v1917
        %vm1920 = vcmask 64512
        %v1922 = vsel %vm1920, %v1914, 0
        %v1925 = vsel %vm1920, %v1919, 0
        %1927 = vmatpush.bf16.xpose.msra.mxu0 0
        %1928 = vmatpush.bf16.xpose.msra.mxu0 0
        %1929 = vmatpush.bf16.xpose.msra.mxu0 0
        %1930 = vmatpush.bf16.xpose.msra.mxu0 0
        %1931 = vmatpush.bf16.xpose.msra.mxu0 0
        %1932 = vmatpush.bf16.xpose.msra.mxu0 0
        %1933 = vmatpush.bf16.xpose.msra.mxu0 0
        %1934 = vmatpush.bf16.xpose.msra.mxu0 %v1925
        %1935 = vmatmul.bf16.gmra.mxu0 %v1922
        %v1936 = vpop.f32.mrf.mxu0
        %v1937 = vadd.f32 0.0, %v1936
        %v1938 = vpop.f32.mrf.mxu0
        %v1939 = vadd.f32 0.0, %v1938
        %1940 = vdwg.mxu0
        %v1943 = vunpack.c.l.b16 %v1408
        %v1944 = vunpack.c.l.b16 %v1409
        %v1945 = vpack.c.b16 %v1944, %v1943
        %v1948 = vunpack.c.l.b16 %v1656
        %v1949 = vunpack.c.l.b16 %v1657
        %v1950 = vpack.c.b16 %v1949, %v1948
        %v1952 = vsel %vm1920, %v1945, 0
        %v1955 = vsel %vm1920, %v1950, 0
        %1957 = vmatpush.bf16.xpose.msra.mxu0 0
        %1958 = vmatpush.bf16.xpose.msra.mxu0 0
        %1959 = vmatpush.bf16.xpose.msra.mxu0 0
        %1960 = vmatpush.bf16.xpose.msra.mxu0 0
        %1961 = vmatpush.bf16.xpose.msra.mxu0 0
        %1962 = vmatpush.bf16.xpose.msra.mxu0 0
        %1963 = vmatpush.bf16.xpose.msra.mxu0 0
        %1964 = vmatpush.bf16.xpose.msra.mxu0 %v1955
        %1965 = vmatmul.bf16.gmra.mxu0 %v1952
        %v1966 = vpop.f32.mrf.mxu0
        %v1967 = vadd.f32 0.0, %v1966
        %v1968 = vpop.f32.mrf.mxu0
        %v1969 = vadd.f32 0.0, %v1968
        %1970 = vdwg.mxu0
        %v1973 = vunpack.c.l.b16 %v1410
        %v1974 = vunpack.c.l.b16 %v1411
        %v1975 = vpack.c.b16 %v1974, %v1973
        %v1978 = vunpack.c.l.b16 %v1658
        %v1979 = vunpack.c.l.b16 %v1659
        %v1980 = vpack.c.b16 %v1979, %v1978
        %v1982 = vsel %vm1920, %v1975, 0
        %v1985 = vsel %vm1920, %v1980, 0
        %1987 = vmatpush.bf16.xpose.msra.mxu0 0
        %1988 = vmatpush.bf16.xpose.msra.mxu0 0
        %1989 = vmatpush.bf16.xpose.msra.mxu0 0
        %1990 = vmatpush.bf16.xpose.msra.mxu0 0
        %1991 = vmatpush.bf16.xpose.msra.mxu0 0
        %1992 = vmatpush.bf16.xpose.msra.mxu0 0
        %1993 = vmatpush.bf16.xpose.msra.mxu0 0
        %1994 = vmatpush.bf16.xpose.msra.mxu0 %v1985
        %1995 = vmatmul.bf16.gmra.mxu0 %v1982
        %v1996 = vpop.f32.mrf.mxu0
        %v1997 = vadd.f32 0.0, %v1996
        %v1998 = vpop.f32.mrf.mxu0
        %v1999 = vadd.f32 0.0, %v1998
        %2000 = vdwg.mxu0
        %v2003 = vunpack.c.l.b16 %v1412
        %v2004 = vunpack.c.l.b16 %v1413
        %v2005 = vpack.c.b16 %v2004, %v2003
        %v2008 = vunpack.c.l.b16 %v1660
        %v2009 = vunpack.c.l.b16 %v1661
        %v2010 = vpack.c.b16 %v2009, %v2008
        %v2012 = vsel %vm1920, %v2005, 0
        %v2015 = vsel %vm1920, %v2010, 0
        %2017 = vmatpush.bf16.xpose.msra.mxu0 0
        %2018 = vmatpush.bf16.xpose.msra.mxu0 0
        %2019 = vmatpush.bf16.xpose.msra.mxu0 0
        %2020 = vmatpush.bf16.xpose.msra.mxu0 0
        %2021 = vmatpush.bf16.xpose.msra.mxu0 0
        %2022 = vmatpush.bf16.xpose.msra.mxu0 0
        %2023 = vmatpush.bf16.xpose.msra.mxu0 0
        %2024 = vmatpush.bf16.xpose.msra.mxu0 %v2015
        %2025 = vmatmul.bf16.gmra.mxu0 %v2012
        %v2026 = vpop.f32.mrf.mxu0
        %v2027 = vadd.f32 0.0, %v2026
        %v2028 = vpop.f32.mrf.mxu0
        %v2029 = vadd.f32 0.0, %v2028
        %2030 = vdwg.mxu0
        %vm2031 = vcmask 130048
        %v2032 = vsel %vm2031, %v1937, -inf
        %2033 = vmax.xlane.f32.xlu0 %v2032
        %v2034 = vpop.xlane.xlu0 %2033
        %v2035 = vsel %vm2031, %v1939, -inf
        %2036 = vmax.xlane.f32.xlu0 %v2035
        %v2037 = vpop.xlane.xlu0 %2036
        %v2038 = vsel %vm2031, %v1967, -inf
        %2039 = vmax.xlane.f32.xlu0 %v2038
        %v2040 = vpop.xlane.xlu0 %2039
        %v2041 = vsel %vm2031, %v1969, -inf
        %2042 = vmax.xlane.f32.xlu0 %v2041
        %v2043 = vpop.xlane.xlu0 %2042
        %v2044 = vsel %vm2031, %v1997, -inf
        %2045 = vmax.xlane.f32.xlu0 %v2044
        %v2046 = vpop.xlane.xlu0 %2045
        %v2047 = vsel %vm2031, %v1999, -inf
        %2048 = vmax.xlane.f32.xlu0 %v2047
        %v2049 = vpop.xlane.xlu0 %2048
        %v2050 = vsel %vm2031, %v2027, -inf
        %2051 = vmax.xlane.f32.xlu0 %v2050
        %v2052 = vpop.xlane.xlu0 %2051
        %v2053 = vsel %vm2031, %v2029, -inf
        %2054 = vmax.xlane.f32.xlu0 %v2053
        %v2055 = vpop.xlane.xlu0 %2054
        %v2056 = vsub.f32 %v1937, %v2034
        %v2057 = vsub.f32 %v1939, %v2037
        %v2058 = vsub.f32 %v1967, %v2040
        %v2059 = vsub.f32 %v1969, %v2043
        %v2060 = vsub.f32 %v1997, %v2046
        %v2061 = vsub.f32 %v1999, %v2049
        %v2062 = vsub.f32 %v2027, %v2052
        %v2063 = vsub.f32 %v2029, %v2055
        %v2064 = vmul.f32 %v2056, 1.442695
        %v2065 = vpow.pop %v2064
        %v2066 = vmul.f32 %v2057, 1.442695
        %v2067 = vpow.pop %v2066
        %v2068 = vmul.f32 %v2058, 1.442695
        %v2069 = vpow.pop %v2068
        %v2070 = vmul.f32 %v2059, 1.442695
        %v2071 = vpow.pop %v2070
        %v2072 = vmul.f32 %v2060, 1.442695
        %v2073 = vpow.pop %v2072
        %v2074 = vmul.f32 %v2061, 1.442695
        %v2075 = vpow.pop %v2074
        %v2076 = vmul.f32 %v2062, 1.442695
        %v2077 = vpow.pop %v2076
        %v2078 = vmul.f32 %v2063, 1.442695
        %v2079 = vpow.pop %v2078
        %v2080 = vsel %vm2031, %v2065, 0.0
        %2081 = vadd.xlane.f32.xlu0 %v2080
        %v2082 = vpop.xlane.xlu0 %2081
        %v2083 = vsel %vm2031, %v2067, 0.0
        %2084 = vadd.xlane.f32.xlu0 %v2083
        %v2085 = vpop.xlane.xlu0 %2084
        %v2086 = vsel %vm2031, %v2069, 0.0
        %2087 = vadd.xlane.f32.xlu0 %v2086
        %v2088 = vpop.xlane.xlu0 %2087
        %v2089 = vsel %vm2031, %v2071, 0.0
        %2090 = vadd.xlane.f32.xlu0 %v2089
        %v2091 = vpop.xlane.xlu0 %2090
        %v2092 = vsel %vm2031, %v2073, 0.0
        %2093 = vadd.xlane.f32.xlu0 %v2092
        %v2094 = vpop.xlane.xlu0 %2093
        %v2095 = vsel %vm2031, %v2075, 0.0
        %2096 = vadd.xlane.f32.xlu0 %v2095
        %v2097 = vpop.xlane.xlu0 %2096
        %v2098 = vsel %vm2031, %v2077, 0.0
        %2099 = vadd.xlane.f32.xlu0 %v2098
        %v2100 = vpop.xlane.xlu0 %2099
        %v2101 = vsel %vm2031, %v2079, 0.0
        %2102 = vadd.xlane.f32.xlu0 %v2101
        %v2103 = vpop.xlane.xlu0 %2102
        %v2104 = vrcp.pop %v2082
        %v2105 = vrcp.pop %v2085
        %v2106 = vrcp.pop %v2088
        %v2107 = vrcp.pop %v2091
        %v2108 = vrcp.pop %v2094
        %v2109 = vrcp.pop %v2097
        %v2110 = vrcp.pop %v2100
        %v2111 = vrcp.pop %v2103
        %v2112 = vmul.f32 %v2065, %v2104
        %v2113 = vmul.f32 %v2067, %v2105
        %v2114 = vmul.f32 %v2069, %v2106
        %v2115 = vmul.f32 %v2071, %v2107
        %v2116 = vmul.f32 %v2073, %v2108
        %v2117 = vmul.f32 %v2075, %v2109
        %v2118 = vmul.f32 %v2077, %v2110
        %v2119 = vmul.f32 %v2079, %v2111
        %v2120 = vpack.c.bf16 %v2112, %v2112
        %v2121 = vpack.c.bf16 %v2113, %v2113
        %v2122 = vpack.c.bf16 %v2114, %v2114
        %v2123 = vpack.c.bf16 %v2115, %v2115
        %v2124 = vpack.c.bf16 %v2116, %v2116
        %v2125 = vpack.c.bf16 %v2117, %v2117
        %v2126 = vpack.c.bf16 %v2118, %v2118
        %v2127 = vpack.c.bf16 %v2119, %v2119
        %v2130 = vunpack.c.l.b16 %v2120
        %v2131 = vunpack.c.l.b16 %v2121
        %v2132 = vpack.c.b16 %v2131, %v2130
        %v2135 = vunpack.c.l.b16 %v1902
        %v2136 = vunpack.c.l.b16 %v1903
        %v2137 = vpack.c.b16 %v2136, %v2135
        %v2140 = vsel %vm2031, %v2132, 0
        %2142 = vmatpush.bf16.msra.mxu0 0
        %2143 = vmatpush.bf16.msra.mxu0 0
        %2144 = vmatpush.bf16.msra.mxu0 0
        %2145 = vmatpush.bf16.msra.mxu0 0
        %2146 = vmatpush.bf16.msra.mxu0 0
        %2147 = vmatpush.bf16.msra.mxu0 0
        %2148 = vmatpush.bf16.msra.mxu0 0
        %2149 = vmatpush.bf16.msra.mxu0 %v2137
        %2150 = vmatmul.bf16.gmra.mxu0 %v2140
        %v2151 = vpop.f32.mrf.mxu0
        %v2152 = vadd.f32 0.0, %v2151
        %v2153 = vpop.f32.mrf.mxu0
        %v2154 = vadd.f32 0.0, %v2153
        %2155 = vdwg.mxu0
        %v2158 = vunpack.c.l.b16 %v2122
        %v2159 = vunpack.c.l.b16 %v2123
        %v2160 = vpack.c.b16 %v2159, %v2158
        %v2163 = vunpack.c.l.b16 %v1904
        %v2164 = vunpack.c.l.b16 %v1905
        %v2165 = vpack.c.b16 %v2164, %v2163
        %v2168 = vsel %vm2031, %v2160, 0
        %2170 = vmatpush.bf16.msra.mxu0 0
        %2171 = vmatpush.bf16.msra.mxu0 0
        %2172 = vmatpush.bf16.msra.mxu0 0
        %2173 = vmatpush.bf16.msra.mxu0 0
        %2174 = vmatpush.bf16.msra.mxu0 0
        %2175 = vmatpush.bf16.msra.mxu0 0
        %2176 = vmatpush.bf16.msra.mxu0 0
        %2177 = vmatpush.bf16.msra.mxu0 %v2165
        %2178 = vmatmul.bf16.gmra.mxu0 %v2168
        %v2179 = vpop.f32.mrf.mxu0
        %v2180 = vadd.f32 0.0, %v2179
        %v2181 = vpop.f32.mrf.mxu0
        %v2182 = vadd.f32 0.0, %v2181
        %2183 = vdwg.mxu0
        %v2186 = vunpack.c.l.b16 %v2124
        %v2187 = vunpack.c.l.b16 %v2125
        %v2188 = vpack.c.b16 %v2187, %v2186
        %v2191 = vunpack.c.l.b16 %v1906
        %v2192 = vunpack.c.l.b16 %v1907
        %v2193 = vpack.c.b16 %v2192, %v2191
        %v2196 = vsel %vm2031, %v2188, 0
        %2198 = vmatpush.bf16.msra.mxu0 0
        %2199 = vmatpush.bf16.msra.mxu0 0
        %2200 = vmatpush.bf16.msra.mxu0 0
        %2201 = vmatpush.bf16.msra.mxu0 0
        %2202 = vmatpush.bf16.msra.mxu0 0
        %2203 = vmatpush.bf16.msra.mxu0 0
        %2204 = vmatpush.bf16.msra.mxu0 0
        %2205 = vmatpush.bf16.msra.mxu0 %v2193
        %2206 = vmatmul.bf16.gmra.mxu0 %v2196
        %v2207 = vpop.f32.mrf.mxu0
        %v2208 = vadd.f32 0.0, %v2207
        %v2209 = vpop.f32.mrf.mxu0
        %v2210 = vadd.f32 0.0, %v2209
        %2211 = vdwg.mxu0
        %v2214 = vunpack.c.l.b16 %v2126
        %v2215 = vunpack.c.l.b16 %v2127
        %v2216 = vpack.c.b16 %v2215, %v2214
        %v2219 = vunpack.c.l.b16 %v1908
        %v2220 = vunpack.c.l.b16 %v1909
        %v2221 = vpack.c.b16 %v2220, %v2219
        %v2224 = vsel %vm2031, %v2216, 0
        %2226 = vmatpush.bf16.msra.mxu0 0
        %2227 = vmatpush.bf16.msra.mxu0 0
        %2228 = vmatpush.bf16.msra.mxu0 0
        %2229 = vmatpush.bf16.msra.mxu0 0
        %2230 = vmatpush.bf16.msra.mxu0 0
        %2231 = vmatpush.bf16.msra.mxu0 0
        %2232 = vmatpush.bf16.msra.mxu0 0
        %2233 = vmatpush.bf16.msra.mxu0 %v2221
        %2234 = vmatmul.bf16.gmra.mxu0 %v2224
        %v2235 = vpop.f32.mrf.mxu0
        %v2236 = vadd.f32 0.0, %v2235
        %v2237 = vpop.f32.mrf.mxu0
        %v2238 = vadd.f32 0.0, %v2237
        %2239 = vdwg.mxu0
        %v2240 = vrot.slane %v2208, 4
        %v2241 = vsel %vm1186, %v2240, %v2152
        %v2242 = vrot.slane %v2152, 4
        %v2243 = vsel %vm1186, %v2208, %v2242
        %v2245 = vunpack.c.l.s4 1983009808
        %v2246 = vunpack.c.0.s8 %v2245
        %v2247 = vperm.slane %v2241, %v2246
        %v2249 = vunpack.c.l.s4 1983009808
        %v2250 = vunpack.c.0.s8 %v2249
        %v2251 = vperm.slane %v2243, %v2250
        %v2252 = vrot.slane %v2236, 4
        %v2253 = vsel %vm1186, %v2252, %v2180
        %v2254 = vrot.slane %v2180, 4
        %v2255 = vsel %vm1186, %v2236, %v2254
        %v2257 = vunpack.c.l.s4 1983009808
        %v2258 = vunpack.c.0.s8 %v2257
        %v2259 = vperm.slane %v2253, %v2258
        %v2261 = vunpack.c.l.s4 1983009808
        %v2262 = vunpack.c.0.s8 %v2261
        %v2263 = vperm.slane %v2255, %v2262
        %v2264 = vrot.slane %v2259, 4
        %v2265 = vsel %vm1186, %v2264, %v2247
        %v2266 = vrot.slane %v2247, 4
        %v2267 = vsel %vm1186, %v2259, %v2266
        %v2269 = vunpack.c.l.s4 1934713408
        %v2270 = vunpack.c.0.s8 %v2269
        %v2271 = vperm.slane %v2265, %v2270
        %v2273 = vunpack.c.l.s4 1934713408
        %v2274 = vunpack.c.0.s8 %v2273
        %v2275 = vperm.slane %v2267, %v2274
        %v2276 = vrot.slane %v2263, 4
        %v2277 = vsel %vm1186, %v2276, %v2251
        %v2278 = vrot.slane %v2251, 4
        %v2279 = vsel %vm1186, %v2263, %v2278
        %v2281 = vunpack.c.l.s4 1934713408
        %v2282 = vunpack.c.0.s8 %v2281
        %v2283 = vperm.slane %v2277, %v2282
        %v2285 = vunpack.c.l.s4 1934713408
        %v2286 = vunpack.c.0.s8 %v2285
        %v2287 = vperm.slane %v2279, %v2286
        %v2288 = vrot.slane %v2271, 4
        %v2289 = vsel %vm1186, 0.0, %v2288
        %v2290 = vrot.slane %v2275, 4
        %v2291 = vsel %vm1186, 0.0, %v2290
        %v2292 = vrot.slane %v2283, 4
        %v2293 = vsel %vm1186, 0.0, %v2292
        %v2294 = vrot.slane %v2287, 4
        %v2295 = vsel %vm1186, 0.0, %v2294
        %v2296 = vrot.slane %v2210, 4
        %v2297 = vsel %vm1186, %v2296, %v2154
        %v2298 = vrot.slane %v2154, 4
        %v2299 = vsel %vm1186, %v2210, %v2298
        %v2301 = vunpack.c.l.s4 1983009808
        %v2302 = vunpack.c.0.s8 %v2301
        %v2303 = vperm.slane %v2297, %v2302
        %v2305 = vunpack.c.l.s4 1983009808
        %v2306 = vunpack.c.0.s8 %v2305
        %v2307 = vperm.slane %v2299, %v2306
        %v2308 = vrot.slane %v2238, 4
        %v2309 = vsel %vm1186, %v2308, %v2182
        %v2310 = vrot.slane %v2182, 4
        %v2311 = vsel %vm1186, %v2238, %v2310
        %v2313 = vunpack.c.l.s4 1983009808
        %v2314 = vunpack.c.0.s8 %v2313
        %v2315 = vperm.slane %v2309, %v2314
        %v2317 = vunpack.c.l.s4 1983009808
        %v2318 = vunpack.c.0.s8 %v2317
        %v2319 = vperm.slane %v2311, %v2318
        %v2320 = vrot.slane %v2315, 4
        %v2321 = vsel %vm1186, %v2320, %v2303
        %v2322 = vrot.slane %v2303, 4
        %v2323 = vsel %vm1186, %v2315, %v2322
        %v2325 = vunpack.c.l.s4 1934713408
        %v2326 = vunpack.c.0.s8 %v2325
        %v2327 = vperm.slane %v2321, %v2326
        %v2329 = vunpack.c.l.s4 1934713408
        %v2330 = vunpack.c.0.s8 %v2329
        %v2331 = vperm.slane %v2323, %v2330
        %v2332 = vrot.slane %v2319, 4
        %v2333 = vsel %vm1186, %v2332, %v2307
        %v2334 = vrot.slane %v2307, 4
        %v2335 = vsel %vm1186, %v2319, %v2334
        %v2337 = vunpack.c.l.s4 1934713408
        %v2338 = vunpack.c.0.s8 %v2337
        %v2339 = vperm.slane %v2333, %v2338
        %v2341 = vunpack.c.l.s4 1934713408
        %v2342 = vunpack.c.0.s8 %v2341
        %v2343 = vperm.slane %v2335, %v2342
        %v2344 = vrot.slane %v2327, 4
        %v2345 = vsel %vm1186, 0.0, %v2344
        %v2346 = vrot.slane %v2331, 4
        %v2347 = vsel %vm1186, 0.0, %v2346
        %v2348 = vrot.slane %v2339, 4
        %v2349 = vsel %vm1186, 0.0, %v2348
        %v2350 = vrot.slane %v2343, 4
        %v2351 = vsel %vm1186, 0.0, %v2350
        %v2352 = vsel %vm1186, %v2290, %v2271
        %v2354 = vunpack.c.l.s4 1983009808
        %v2355 = vunpack.c.0.s8 %v2354
        %v2356 = vperm.slane %v2352, %v2355
        %v2357 = vrot.slane %v2291, 4
        %v2358 = vsel %vm1186, %v2357, %v2289
        %v2360 = vunpack.c.l.s4 1983009808
        %v2361 = vunpack.c.0.s8 %v2360
        %v2362 = vperm.slane %v2358, %v2361
        %v2363 = vsel %vm1186, %v2294, %v2283
        %v2365 = vunpack.c.l.s4 1983009808
        %v2366 = vunpack.c.0.s8 %v2365
        %v2367 = vperm.slane %v2363, %v2366
        %v2368 = vrot.slane %v2295, 4
        %v2369 = vsel %vm1186, %v2368, %v2293
        %v2371 = vunpack.c.l.s4 1983009808
        %v2372 = vunpack.c.0.s8 %v2371
        %v2373 = vperm.slane %v2369, %v2372
        %v2374 = vrot.slane %v2362, 4
        %v2375 = vsel %vm1186, %v2374, %v2356
        %v2376 = vrot.slane %v2356, 4
        %v2377 = vsel %vm1186, %v2362, %v2376
        %v2379 = vunpack.c.l.s4 1934713408
        %v2380 = vunpack.c.0.s8 %v2379
        %v2381 = vperm.slane %v2375, %v2380
        %v2383 = vunpack.c.l.s4 1934713408
        %v2384 = vunpack.c.0.s8 %v2383
        %v2385 = vperm.slane %v2377, %v2384
        %v2386 = vrot.slane %v2373, 4
        %v2387 = vsel %vm1186, %v2386, %v2367
        %v2388 = vrot.slane %v2367, 4
        %v2389 = vsel %vm1186, %v2373, %v2388
        %v2391 = vunpack.c.l.s4 1934713408
        %v2392 = vunpack.c.0.s8 %v2391
        %v2393 = vperm.slane %v2387, %v2392
        %v2395 = vunpack.c.l.s4 1934713408
        %v2396 = vunpack.c.0.s8 %v2395
        %v2397 = vperm.slane %v2389, %v2396
        %v2398 = vrot.slane %v2393, 4
        %v2399 = vsel %vm1186, %v2398, %v2381
        %v2400 = vrot.slane %v2381, 4
        %v2401 = vsel %vm1186, %v2393, %v2400
        %v2402 = vrot.slane %v2397, 4
        %v2403 = vsel %vm1186, %v2402, %v2385
        %v2404 = vrot.slane %v2385, 4
        %v2405 = vsel %vm1186, %v2397, %v2404
        %v2406 = vsel %vm1186, %v2346, %v2327
        %v2408 = vunpack.c.l.s4 1983009808
        %v2409 = vunpack.c.0.s8 %v2408
        %v2410 = vperm.slane %v2406, %v2409
        %v2411 = vrot.slane %v2347, 4
        %v2412 = vsel %vm1186, %v2411, %v2345
        %v2414 = vunpack.c.l.s4 1983009808
        %v2415 = vunpack.c.0.s8 %v2414
        %v2416 = vperm.slane %v2412, %v2415
        %v2417 = vsel %vm1186, %v2350, %v2339
        %v2419 = vunpack.c.l.s4 1983009808
        %v2420 = vunpack.c.0.s8 %v2419
        %v2421 = vperm.slane %v2417, %v2420
        %v2422 = vrot.slane %v2351, 4
        %v2423 = vsel %vm1186, %v2422, %v2349
        %v2425 = vunpack.c.l.s4 1983009808
        %v2426 = vunpack.c.0.s8 %v2425
        %v2427 = vperm.slane %v2423, %v2426
        %v2428 = vrot.slane %v2416, 4
        %v2429 = vsel %vm1186, %v2428, %v2410
        %v2430 = vrot.slane %v2410, 4
        %v2431 = vsel %vm1186, %v2416, %v2430
        %v2433 = vunpack.c.l.s4 1934713408
        %v2434 = vunpack.c.0.s8 %v2433
        %v2435 = vperm.slane %v2429, %v2434
        %v2437 = vunpack.c.l.s4 1934713408
        %v2438 = vunpack.c.0.s8 %v2437
        %v2439 = vperm.slane %v2431, %v2438
        %v2440 = vrot.slane %v2427, 4
        %v2441 = vsel %vm1186, %v2440, %v2421
        %v2442 = vrot.slane %v2421, 4
        %v2443 = vsel %vm1186, %v2427, %v2442
        %v2445 = vunpack.c.l.s4 1934713408
        %v2446 = vunpack.c.0.s8 %v2445
        %v2447 = vperm.slane %v2441, %v2446
        %v2449 = vunpack.c.l.s4 1934713408
        %v2450 = vunpack.c.0.s8 %v2449
        %v2451 = vperm.slane %v2443, %v2450
        %v2452 = vrot.slane %v2447, 4
        %v2453 = vsel %vm1186, %v2452, %v2435
        %v2454 = vrot.slane %v2435, 4
        %v2455 = vsel %vm1186, %v2447, %v2454
        %v2456 = vrot.slane %v2451, 4
        %v2457 = vsel %vm1186, %v2456, %v2439
        %v2458 = vrot.slane %v2439, 4
        %v2459 = vsel %vm1186, %v2451, %v2458
        %2462 = vrot.lane.b32.xlu0 %v2401, 8
        %v2463 = vpop.permute.xlu0 %2462
        %2464 = vrot.lane.b32.xlu0 %v2455, 8
        %v2465 = vpop.permute.xlu0 %2464
        %2470 = vrot.lane.b32.xlu0 %v2403, 16
        %v2471 = vpop.permute.xlu0 %2470
        %2472 = vrot.lane.b32.xlu0 %v2457, 16
        %v2473 = vpop.permute.xlu0 %2472
        %2478 = vrot.lane.b32.xlu0 %v2405, 24
        %v2479 = vpop.permute.xlu0 %2478
        %2480 = vrot.lane.b32.xlu0 %v2459, 24
        %v2481 = vpop.permute.xlu0 %2480
        %v2484 = vsel %vm1920, %v2399, %v2463
        %v2485 = vsel %vm1920, %v2453, %v2465
        %v2486 = vsel %vm2031, %v2484, %v2471
        %v2487 = vsel %vm2031, %v2485, %v2473
        %vm2488 = vcmask 195584
        %v2489 = vsel %vm2488, %v2486, %v2479
        %v2490 = vsel %vm2488, %v2487, %v2481
        %v2491 = vpack.c.bf16 %v2490, %v2489
        %v2492 = vld [vmem:[%s750] sm:$0xf]
        %v2493 = vld [vmem:[%s750 + $0x4] sm:$0xf]
        %v2494 = vld [vmem:[%s750 + $0x8] sm:$0xf]
        %v2495 = vld [vmem:[%s750 + $0xc] sm:$0xf]
        %v2496 = vld [vmem:[%s916] sm:$0x1]
        %v2498 = vperm.slane %v2496, 0
        %v2504 = vunpack.c.l.b16 %v2492
        %v2505 = vunpack.c.l.b16 %v2493
        %v2506 = vunpack.c.l.b16 %v2494
        %v2507 = vunpack.c.l.b16 %v2495
        %v2508 = vpack.c.b16 %v2505, %v2504
        %v2509 = vpack.c.b16 %v2507, %v2506
        %v2513 = vsel %vm995, %v2491, 0
        %2515 = vmatpush.bf16.msra.mxu0 0
        %2516 = vmatpush.bf16.msra.mxu0 0
        %2517 = vmatpush.bf16.msra.mxu0 0
        %2518 = vmatpush.bf16.msra.mxu0 0
        %2519 = vmatpush.bf16.msra.mxu0 0
        %2520 = vmatpush.bf16.msra.mxu0 0
        %2521 = vmatpush.bf16.msra.mxu0 %v2509
        %2522 = vmatpush.bf16.msra.mxu0 %v2508
        %2523 = vmatmul.bf16.gmra.mxu0 %v2513
        %v2524 = vpop.f32.mrf.mxu0
        %v2525 = vadd.f32 %v2498, %v2524
        %v2526 = vpop.f32.mrf.mxu0
        %v2527 = vadd.f32 %v2498, %v2526
        %2528 = vdwg.mxu0
        %v2529 = vadd.f32 %v991, %v2525
        %v2530 = vadd.f32 %v992, %v2527
        %v2531 = vld [vmem:[%s759] sm:$0x1]
        %v2532 = vld [vmem:[%s768] sm:$0x1]
        %v2533 = vsel %vm995, %v2529, 0.0
        %2534 = vadd.xlane.f32.xlu0 %v2533
        %v2535 = vpop.xlane.xlu0 %2534
        %v2536 = vsel %vm995, %v2530, 0.0
        %2537 = vadd.xlane.f32.xlu0 %v2536
        %v2538 = vpop.xlane.xlu0 %2537
        %v2539 = vmul.f32 %v2535, %v1008
        %v2540 = vmul.f32 %v2538, %v1008
        %v2541 = vsub.f32 %v2529, %v2539
        %v2542 = vsub.f32 %v2530, %v2540
        %v2543 = vmul.f32 %v2541, %v2541
        %v2544 = vmul.f32 %v2542, %v2542
        %v2545 = vsel %vm995, %v2543, 0.0
        %2546 = vadd.xlane.f32.xlu0 %v2545
        %v2547 = vpop.xlane.xlu0 %2546
        %v2548 = vsel %vm995, %v2544, 0.0
        %2549 = vadd.xlane.f32.xlu0 %v2548
        %v2550 = vpop.xlane.xlu0 %2549
        %v2551 = vmul.f32 %v2547, %v1008
        %v2552 = vmul.f32 %v2550, %v1008
        %v2553 = vadd.f32 %v2551, 1e-06
        %v2554 = vadd.f32 %v2552, 1e-06
        %v2555 = vrsqrt.pop %v2553
        %v2556 = vmul.f32 %v2555, %v2553
        %v2557 = vmul.f32 %v2556, %v2555
        %v2558 = vmul.f32 0.5, %v2557
        %v2559 = vsub.f32 1.5, %v2558
        %v2560 = vmul.f32 %v2555, %v2559
        %vm2561 = vweird.f32 %v2553
        %vm2562 = vweird.f32 %v2555
        %vm2563 = vmor %vm2561, %vm2562
        %v2564 = vsel %vm2563, %v2555, %v2560
        %v2565 = vrsqrt.pop %v2554
        %v2566 = vmul.f32 %v2565, %v2554
        %v2567 = vmul.f32 %v2566, %v2565
        %v2568 = vmul.f32 0.5, %v2567
        %v2569 = vsub.f32 1.5, %v2568
        %v2570 = vmul.f32 %v2565, %v2569
        %vm2571 = vweird.f32 %v2554
        %vm2572 = vweird.f32 %v2565
        %vm2573 = vmor %vm2571, %vm2572
        %v2574 = vsel %vm2573, %v2565, %v2570
        %v2575 = vmul.f32 %v2541, %v2564
        %v2576 = vmul.f32 %v2542, %v2574
        %v2578 = vperm.slane %v2531, 0
        %v2580 = vmul.f32 %v2575, %v2578
        %v2581 = vmul.f32 %v2576, %v2578
        %v2583 = vperm.slane %v2532, 0
        %v2585 = vadd.f32 %v2580, %v2583
        %v2586 = vadd.f32 %v2581, %v2583
        %v2587 = vpack.c.bf16 %v2586, %v2585
        %v2588 = vld [vmem:[%s778] sm:$0xf]
        %v2589 = vld [vmem:[%s778 + $0x4] sm:$0xf]
        %v2590 = vld [vmem:[%s778 + $0x8] sm:$0xf]
        %v2591 = vld [vmem:[%s778 + $0xc] sm:$0xf]
        %v2592 = vld [vmem:[%s787] sm:$0x1]
        %v2594 = vperm.slane %v2592, 0
        %v2600 = vunpack.c.l.b16 %v2588
        %v2601 = vunpack.c.l.b16 %v2589
        %v2602 = vunpack.c.l.b16 %v2590
        %v2603 = vunpack.c.l.b16 %v2591
        %v2604 = vpack.c.b16 %v2601, %v2600
        %v2605 = vpack.c.b16 %v2603, %v2602
        %v2609 = vsel %vm995, %v2587, 0
        %2611 = vmatpush.bf16.msra.mxu0 0
        %2612 = vmatpush.bf16.msra.mxu0 0
        %2613 = vmatpush.bf16.msra.mxu0 0
        %2614 = vmatpush.bf16.msra.mxu0 0
        %2615 = vmatpush.bf16.msra.mxu0 0
        %2616 = vmatpush.bf16.msra.mxu0 0
        %2617 = vmatpush.bf16.msra.mxu0 %v2605
        %2618 = vmatpush.bf16.msra.mxu0 %v2604
        %2619 = vmatmul.bf16.gmra.mxu0 %v2609
        %v2620 = vpop.f32.mrf.mxu0
        %v2621 = vadd.f32 %v2594, %v2620
        %v2622 = vpop.f32.mrf.mxu0
        %v2623 = vadd.f32 %v2594, %v2622
        %2624 = vdwg.mxu0
        %v2625 = vmul.f32 %v2621, %v2621
        %v2626 = vmul.f32 %v2623, %v2623
        %v2627 = vmul.f32 %v2621, %v2625
        %v2628 = vmul.f32 %v2623, %v2626
        %v2629 = vmul.f32 %v2627, 0.044715
        %v2630 = vmul.f32 %v2628, 0.044715
        %v2631 = vadd.f32 %v2621, %v2629
        %v2632 = vadd.f32 %v2623, %v2630
        %v2633 = vmul.f32 %v2631, 0.7978846
        %v2634 = vmul.f32 %v2632, 0.7978846
        %v2635 = vtanh.pop %v2633
        %v2636 = vtanh.pop %v2634
        %v2637 = vadd.f32 %v2635, 1.0
        %v2638 = vadd.f32 %v2636, 1.0
        %v2639 = vmul.f32 %v2637, 0.5
        %v2640 = vmul.f32 %v2638, 0.5
        %v2641 = vmul.f32 %v2621, %v2639
        %v2642 = vmul.f32 %v2623, %v2640
        %v2643 = vpack.c.bf16 %v2642, %v2641
        %v2644 = vld [vmem:[%s921] sm:$0xf]
        %v2645 = vld [vmem:[%s921 + $0x4] sm:$0xf]
        %v2646 = vld [vmem:[%s921 + $0x8] sm:$0xf]
        %v2647 = vld [vmem:[%s921 + $0xc] sm:$0xf]
        %v2648 = vld [vmem:[%s921 + $0x10] sm:$0xf]
        %v2649 = vld [vmem:[%s921 + $0x14] sm:$0xf]
        %v2650 = vld [vmem:[%s921 + $0x18] sm:$0xf]
        %v2651 = vld [vmem:[%s921 + $0x1c] sm:$0xf]
        %v2652 = vld [vmem:[%s796] sm:$0x1]
        %v2654 = vperm.slane %v2652, 0
        %v2664 = vunpack.c.l.b16 %v2644
        %v2665 = vunpack.c.l.b16 %v2645
        %v2666 = vunpack.c.l.b16 %v2646
        %v2667 = vunpack.c.l.b16 %v2647
        %v2668 = vunpack.c.l.b16 %v2648
        %v2669 = vunpack.c.l.b16 %v2649
        %v2670 = vunpack.c.l.b16 %v2650
        %v2671 = vunpack.c.l.b16 %v2651
        %v2672 = vpack.c.b16 %v2665, %v2664
        %v2673 = vpack.c.b16 %v2667, %v2666
        %v2674 = vpack.c.b16 %v2669, %v2668
        %v2675 = vpack.c.b16 %v2671, %v2670
        %vm2680 = vcmask 523264
        %v2682 = vsel %vm2680, %v2643, 0
        %2684 = vmatpush.bf16.msra.mxu0 0
        %2685 = vmatpush.bf16.msra.mxu0 0
        %2686 = vmatpush.bf16.msra.mxu0 0
        %2687 = vmatpush.bf16.msra.mxu0 0
        %2688 = vmatpush.bf16.msra.mxu0 %v2675
        %2689 = vmatpush.bf16.msra.mxu0 %v2674
        %2690 = vmatpush.bf16.msra.mxu0 %v2673
        %2691 = vmatpush.bf16.msra.mxu0 %v2672
        %2692 = vmatmul.bf16.gmra.mxu0 %v2682
        %v2693 = vpop.f32.mrf.mxu0
        %v2694 = vadd.f32 %v2654, %v2693
        %v2695 = vpop.f32.mrf.mxu0
        %v2696 = vadd.f32 %v2654, %v2695
        %2697 = vdwg.mxu0
        %v2698 = vadd.f32 %v2529, %v2694
        %v2699 = vadd.f32 %v2530, %v2696
        %2700 = vst.msk [vmem:[#allocation2] sm:$0xff] %vm995, %v2698
        %2701 = vst.msk [vmem:[#allocation2 + $0x8] sm:$0xff] %vm995, %v2699
        %p2702 = scmp.eq.s32.totalorder %s49, 1
        // Predicated region
        $region125: #{tpu_custom_call.1} parent=91 // pred_check
          %p2703 = pneg %p2702
        $region126: #{tpu_custom_call.1} parent=91 // pred_check_branch
          %2705 = sbr.rel (%p2703) target = $region128
        $region127: #{tpu_custom_call.1} parent=91 // pred_region
          %v2706 = vld [vmem:[%s16] sm:$0x1]
          %v2707 = vld [vmem:[%s17] sm:$0x1]
          %v2708 = vsel %vm995, %v2698, 0.0
          %2709 = vadd.xlane.f32.xlu0 %v2708
          %v2710 = vpop.xlane.xlu0 %2709
          %v2711 = vsel %vm995, %v2699, 0.0
          %2712 = vadd.xlane.f32.xlu0 %v2711
          %v2713 = vpop.xlane.xlu0 %2712
          %v2714 = vmul.f32 %v2710, %v1008
          %v2715 = vmul.f32 %v2713, %v1008
          %v2716 = vsub.f32 %v2698, %v2714
          %v2717 = vsub.f32 %v2699, %v2715
          %v2718 = vmul.f32 %v2716, %v2716
          %v2719 = vmul.f32 %v2717, %v2717
          %v2720 = vsel %vm995, %v2718, 0.0
          %2721 = vadd.xlane.f32.xlu0 %v2720
          %v2722 = vpop.xlane.xlu0 %2721
          %v2723 = vsel %vm995, %v2719, 0.0
          %2724 = vadd.xlane.f32.xlu0 %v2723
          %v2725 = vpop.xlane.xlu0 %2724
          %v2726 = vmul.f32 %v2722, %v1008
          %v2727 = vmul.f32 %v2725, %v1008
          %v2728 = vadd.f32 %v2726, 1e-06
          %v2729 = vadd.f32 %v2727, 1e-06
          %v2730 = vrsqrt.pop %v2728
          %v2731 = vmul.f32 %v2730, %v2728
          %v2732 = vmul.f32 %v2731, %v2730
          %v2733 = vmul.f32 0.5, %v2732
          %v2734 = vsub.f32 1.5, %v2733
          %v2735 = vmul.f32 %v2730, %v2734
          %vm2736 = vweird.f32 %v2728
          %vm2737 = vweird.f32 %v2730
          %vm2738 = vmor %vm2736, %vm2737
          %v2739 = vsel %vm2738, %v2730, %v2735
          %v2740 = vrsqrt.pop %v2729
          %v2741 = vmul.f32 %v2740, %v2729
          %v2742 = vmul.f32 %v2741, %v2740
          %v2743 = vmul.f32 0.5, %v2742
          %v2744 = vsub.f32 1.5, %v2743
          %v2745 = vmul.f32 %v2740, %v2744
          %vm2746 = vweird.f32 %v2729
          %vm2747 = vweird.f32 %v2740
          %vm2748 = vmor %vm2746, %vm2747
          %v2749 = vsel %vm2748, %v2740, %v2745
          %v2750 = vmul.f32 %v2716, %v2739
          %v2751 = vmul.f32 %v2717, %v2749
          %v2753 = vperm.slane %v2706, 0
          %v2755 = vmul.f32 %v2750, %v2753
          %v2756 = vmul.f32 %v2751, %v2753
          %v2758 = vperm.slane %v2707, 0
          %v2760 = vadd.f32 %v2755, %v2758
          %v2761 = vadd.f32 %v2756, %v2758
          %2762 = vst.msk [vmem:[%s898] sm:$0xff] %vm995, %v2760
          %2763 = vst.msk [vmem:[%s898 + $0x8] sm:$0xff] %vm995, %v2761
        $region128: #{tpu_custom_call.1} parent=91 // pred_fallthru
          _
        %s2764 = sand.u32 %s507, 1
        %s2765 = scalar_lea.sflag [#allocation5], %s2764
        %s2766 = sand.u32 %s507, 1
        %s2767 = smul.addr %s2766, 16
        %s2768 = scalar_lea.vmem [#allocation15], %s2767
        // Predicated region
        $region129: #{tpu_custom_call.1} parent=91 // pred_check
          %p2769 = pneg %p517
        $region130: #{tpu_custom_call.1} parent=91 // pred_check_branch
          %2771 = sbr.rel (%p2769) target = $region132
        $region131: #{tpu_custom_call.1} parent=91 // pred_region
          %2773 = vsyncadd %s2765, 0
          %s2774 = smul.addr %s48, 2
          %s2775 = smul.addr %s2774, 8
          %s2776 = scalar_lea.hbm %s18, %s2775
          %s2777 = sshll.u32 %s2768, 4
          %s2778 = int_to_ptr.vmem [resolvable:$true] %s2777
          %s2779 = sshll.u32 %s2776, 4
          %s2780 = int_to_ptr.hbm [resolvable:$true] %s2779
          %2785 = dma.vmem_to_hbm [thread:$0]  %s2778, 256, %s2780, %s2765, 128, 128, 8
        $region132: #{tpu_custom_call.1} parent=91 // pred_fallthru
          _
      $region92: #{tpu_custom_call.1} parent=5 // pred_fallthru
        _
      %p2786 = scmp.le.s32.totalorder 2, %s39
      // Predicated region
      $region133: #{tpu_custom_call.1} parent=5 // pred_check
        %p2787 = pneg %p2786
      $region134: #{tpu_custom_call.1} parent=5 // pred_check_branch
        %2789 = sbr.rel (%p2787) target = $region136
      $region135: #{tpu_custom_call.1} parent=5 // pred_region
        %s2790 = ssub.s32 %s39, 2
        // Predicated region
        $region137: #{tpu_custom_call.1} parent=135 // pred_check
          %p2791 = pneg %p523
        $region138: #{tpu_custom_call.1} parent=135 // pred_check_branch
          %2793 = sbr.rel (%p2791) target = $region140
        $region139: #{tpu_custom_call.1} parent=135 // pred_region
          %s2794 = sand.u32 %s508, 1
          %s2795 = scalar_lea.sflag [#allocation5], %s2794
          %s2796 = sand.u32 %s508, 1
          %s2797 = smul.addr %s2796, 16
          %s2798 = scalar_lea.vmem [#allocation15], %s2797
          %2800 = dma.done %s2795, 256
        $region140: #{tpu_custom_call.1} parent=135 // pred_fallthru
          _
      $region136: #{tpu_custom_call.1} parent=5 // pred_fallthru
        _
    $region6: #{tpu_custom_call.1} parent=1 // loop_footer
      %s43 = sadd.s32 1, %s39
    $region7: #{tpu_custom_call.1} parent=1 // loop_footer_branch
      %38 = sbr.rel target = $region3
    $region8: #{tpu_custom_call.1} parent=1 // loop_exit
      _
    %2801 = vsyncpa [#allocation4], 1
    %s2802 = scalar_lea.sflag [#allocation4], 1
    %2803 = vsyncpa %s2802, 1
    %2804 = vsyncpa [#allocation7], 1
    %s2805 = scalar_lea.sflag [#allocation7], 1
    %2806 = vsyncpa %s2805, 1
    %2807 = vsyncpa [#allocation10], 1
    %s2808 = scalar_lea.sflag [#allocation10], 1
    %2809 = vsyncpa %s2808, 1
    %2810 = vsyncpa [#allocation13], 1
    %s2811 = scalar_lea.sflag [#allocation13], 1
    %2812 = vsyncpa %s2811, 1
    %2813 = vsyncpa [#allocation5], 1
    %s2814 = scalar_lea.sflag [#allocation5], 1
    %2815 = vsyncpa %s2814, 1

</llo_original>
